<compile_context>
chip_gen: v7x
topology: tpu7x:2x2x1
jax: 0.10.0
libtpu: 0.0.40
codegen_flags: <defaults>
</compile_context>

<pallas_src>
import functools

import jax
import jax.numpy as jnp
from jax.experimental import pallas as pl
from jax.experimental.pallas import tpu as pltpu


_VMEM_LIMIT = 32 * 1024 * 1024  # safe on v5e/v6e (128 MiB) and v7x (64 MiB)


def _pick_tile(m, target):
    """Largest divisor of m that is a multiple of 16 and <= target, else m."""
    if m <= target:
        return m
    start = target - (target % 16)
    for t in range(start, 15, -16):
        if m % t == 0:
            return t
    return m


# ----------------------------------------------------------------------------
# Pallas kernels
# ----------------------------------------------------------------------------
def _conv_pool_relu_kernel(a00_ref, a01_ref, a10_ref, a11_ref, w_ref, b_ref,
                           o_ref):
    # o = relu( max_{2x2 window}( im2col_quadrant @ W ) + bias )
    # The four inputs are the im2col matrices of the four positions of each
    # 2x2 pooling window; the un-pooled conv output never leaves VMEM.
    w = w_ref[...]                               # bf16 [K, N]
    m00 = jnp.dot(a00_ref[...], w, preferred_element_type=jnp.float32)
    m01 = jnp.dot(a01_ref[...], w, preferred_element_type=jnp.float32)
    m10 = jnp.dot(a10_ref[...], w, preferred_element_type=jnp.float32)
    m11 = jnp.dot(a11_ref[...], w, preferred_element_type=jnp.float32)
    m = jnp.maximum(jnp.maximum(m00, m01), jnp.maximum(m10, m11))
    # bias is constant over the window, so adding it after the max is exact
    o_ref[...] = jnp.maximum(m + b_ref[...], 0.0).astype(o_ref.dtype)


def conv_pool_relu(quads, w, b, *, tile_target=1024):
    m_rows, k = quads[0].shape
    k2, n = w.shape
    assert k == k2
    tm = _pick_tile(m_rows, tile_target)
    a_spec = pl.BlockSpec((tm, k), lambda i: (i, 0))
    return pl.pallas_call(
        _conv_pool_relu_kernel,
        out_shape=jax.ShapeDtypeStruct((m_rows, n), jnp.bfloat16),
        grid=(m_rows // tm,),
        in_specs=[a_spec, a_spec, a_spec, a_spec,
                  pl.BlockSpec((k, n), lambda i: (0, 0)),   # weights pinned
                  pl.BlockSpec((1, n), lambda i: (0, 0))],  # bias pinned
        out_specs=pl.BlockSpec((tm, n), lambda i: (i, 0)),
        compiler_params=pltpu.CompilerParams(
            dimension_semantics=("parallel",),
            vmem_limit_bytes=_VMEM_LIMIT),
    )(*quads, w, b)


def _fc_head_kernel(x_ref, w3_ref, b3_ref, w4_ref, b4_ref, o_ref, *,
                    pre_softmax):
    # fused: fc1 -> relu -> dropout(identity, eval) -> fc2 -> log_softmax
    # TODO(synk): F.dropout / Dropout2d are identity here (eval mode);
    #             training-mode RNG dropout not implemented.
    h = (jnp.dot(x_ref[...], w3_ref[...], preferred_element_type=jnp.float32)
         + b3_ref[...])
    h = jnp.maximum(h, 0.0)
    logits = (jnp.dot(h.astype(jnp.bfloat16), w4_ref[...],
                      preferred_element_type=jnp.float32) + b4_ref[...])
    if pre_softmax:
        o_ref[...] = logits
    else:
        m = jnp.max(logits, axis=1, keepdims=True)
        z = logits - m
        lse = jnp.log(jnp.sum(jnp.exp(z), axis=1, keepdims=True))
        o_ref[...] = z - lse


def fc_head(x, w3, b3, w4, b4, pre_softmax=False):
    bsz, d = x.shape          # (B, 320)
    _, hdim = w3.shape        # (320, 50)
    _, odim = w4.shape        # (50, 10)
    tb = _pick_tile(bsz, 256)
    kernel = functools.partial(_fc_head_kernel, pre_softmax=pre_softmax)
    return pl.pallas_call(
        kernel,
        out_shape=jax.ShapeDtypeStruct((bsz, odim), jnp.float32),
        grid=(bsz // tb,),
        in_specs=[pl.BlockSpec((tb, d), lambda i: (i, 0)),
                  pl.BlockSpec((d, hdim), lambda i: (0, 0)),
                  pl.BlockSpec((1, hdim), lambda i: (0, 0)),
                  pl.BlockSpec((hdim, odim), lambda i: (0, 0)),
                  pl.BlockSpec((1, odim), lambda i: (0, 0))],
        out_specs=pl.BlockSpec((tb, odim), lambda i: (i, 0)),
        compiler_params=pltpu.CompilerParams(
            dimension_semantics=("parallel",),
            vmem_limit_bytes=_VMEM_LIMIT),
    )(x, w3, b3, w4, b4)


# ----------------------------------------------------------------------------
# Plain-JAX layout glue
# ----------------------------------------------------------------------------
def im2col_pool_quadrants(x, k):
    """x: [B,H,W,C] NHWC -> four im2col matrices [B*Hp*Wp, k*k*C], one per
    2x2-pooling quadrant, feature order (kh, kw, ci)."""
    b, h, w, c = x.shape
    hc, wc = h - k + 1, w - k + 1      # conv output size
    hp, wp = hc // 2, wc // 2          # pooled output size
    cols = jnp.concatenate(
        [x[:, kh:kh + hc, kw:kw + wc, :] for kh in range(k) for kw in range(k)],
        axis=-1)                                            # [B, Hc, Wc, k*k*C]
    return [cols[:, dh:dh + 2 * hp:2, dw:dw + 2 * wp:2, :]
            .reshape(b * hp * wp, k * k * c)
            for dh in (0, 1) for dw in (0, 1)]


def init_params(key):
    """Deterministic PyTorch-shaped params, re-laid-out for the kernels."""
    ks = jax.random.split(key, 8)

    def u(k, shape, fan_in):
        bound = 1.0 / float(fan_in) ** 0.5
        return jax.random.uniform(k, shape, jnp.float32, -bound, bound)

    w1 = u(ks[0], (10, 1, 5, 5), 25);    b1 = u(ks[1], (10,), 25)
    w2 = u(ks[2], (20, 10, 5, 5), 250);  b2 = u(ks[3], (20,), 250)
    w3 = u(ks[4], (50, 320), 320);       b3 = u(ks[5], (50,), 320)
    w4 = u(ks[6], (10, 50), 50);         b4 = u(ks[7], (10,), 50)

    # conv weight [Cout,Cin,kh,kw] -> [(kh,kw,ci), Cout]
    w1r = jnp.transpose(w1, (2, 3, 1, 0)).reshape(25, 10)
    w2r = jnp.transpose(w2, (2, 3, 1, 0)).reshape(250, 20)
    # fc1: PyTorch flattens (c,h,w); our in-kernel flatten is (h,w,c) ->
    # permute the weight columns once here instead of transposing activations.
    w3r = jnp.transpose(w3.reshape(50, 20, 4, 4), (0, 2, 3, 1)).reshape(50, 320).T
    w4r = w4.T

    return {
        "w1": w1r.astype(jnp.bfloat16), "b1": b1.reshape(1, 10),
        "w2": w2r.astype(jnp.bfloat16), "b2": b2.reshape(1, 20),
        "w3": w3r.astype(jnp.bfloat16), "b3": b3.reshape(1, 50),
        "w4": w4r.astype(jnp.bfloat16), "b4": b4.reshape(1, 10),
    }


def cnn_forward(x_nchw, params, pre_softmax=False):
    """x_nchw: [B, 1, 28, 28] float32 (PyTorch layout). Returns [B, 10]."""
    x = jnp.transpose(x_nchw, (0, 2, 3, 1)).astype(jnp.bfloat16)  # NHWC bf16
    bsz = x.shape[0]

    # conv1 + maxpool2 + relu  (fused kernel)
    q1 = im2col_pool_quadrants(x, 5)
    p1 = conv_pool_relu(q1, params["w1"], params["b1"])            # [B*144, 10]
    p1 = p1.reshape(bsz, 12, 12, 10)

    # conv2 + dropout2d(identity, eval) + maxpool2 + relu  (fused kernel)
    q2 = im2col_pool_quadrants(p1, 5)
    p2 = conv_pool_relu(q2, params["w2"], params["b2"])            # [B*16, 20]

    # flatten in (h, w, c) order — fc1 weights were permuted to match
    flat = p2.reshape(bsz, 320)

    # fc1 -> relu -> dropout(identity) -> fc2 -> log_softmax  (fused kernel)
    return fc_head(flat, params["w3"], params["b3"],
                   params["w4"], params["b4"], pre_softmax)


# ----------------------------------------------------------------------------
if __name__ == "__main__":
    key = jax.random.PRNGKey(0)
    k_x, k_p = jax.random.split(key)

    x = jax.random.normal(k_x, (2, 1, 28, 28), dtype=jnp.float32)
    params = init_params(k_p)

    fwd = jax.jit(cnn_forward, static_argnames=("pre_softmax",))

    out = jax.block_until_ready(fwd(x, params, pre_softmax=False))
    assert out.shape == (2, 10), out.shape
    # sanity: rows of log_softmax must logsumexp to ~0
    assert jnp.allclose(jax.scipy.special.logsumexp(out, axis=1), 0.0, atol=1e-3)

    logits = jax.block_until_ready(fwd(x, params, pre_softmax=True))
    assert logits.shape == (2, 10), logits.shape

    print("KERNEL_OK")
</pallas_src>

<mosaic_0001>
module attributes {stable_mosaic.version = 11 : i64} {
  func.func @_conv_pool_relu_kernel(%arg0: i32, %arg1: memref<288x25xbf16, #tpu.memory_space<vmem>>, %arg2: memref<288x25xbf16, #tpu.memory_space<vmem>>, %arg3: memref<288x25xbf16, #tpu.memory_space<vmem>>, %arg4: memref<288x25xbf16, #tpu.memory_space<vmem>>, %arg5: memref<25x10xbf16, #tpu.memory_space<vmem>>, %arg6: memref<1x10xf32, #tpu.memory_space<vmem>>, %arg7: memref<288x10xbf16, #tpu.memory_space<vmem>>) attributes {dimension_semantics = [#tpu.dimension_semantics<parallel>], iteration_bounds = array<i64: 1>, scalar_prefetch = 0 : i64, scratch_operands = 0 : i64, tpu.core_type = #tpu.core_type<tc>, window_params = [{transform_indices = @transform_0, window_bounds = array<i64: 288, 25>}, {transform_indices = @transform_1, window_bounds = array<i64: 288, 25>}, {transform_indices = @transform_2, window_bounds = array<i64: 288, 25>}, {transform_indices = @transform_3, window_bounds = array<i64: 288, 25>}, {pipeline_mode = #tpu.pipeline_mode<synchronous>, transform_indices = @transform_4, window_bounds = array<i64: 25, 10>}, {pipeline_mode = #tpu.pipeline_mode<synchronous>, transform_indices = @transform_5, window_bounds = array<i64: 1, 10>}, {transform_indices = @transform_6, window_bounds = array<i64: 288, 10>}]} {
    %c0 = arith.constant 0 : index
    %c0_0 = arith.constant 0 : index
    %0 = vector.load %arg5[%c0, %c0_0] : memref<25x10xbf16, #tpu.memory_space<vmem>>, vector<25x10xbf16>
    %c0_1 = arith.constant 0 : index
    %c0_2 = arith.constant 0 : index
    %1 = vector.load %arg1[%c0_1, %c0_2] : memref<288x25xbf16, #tpu.memory_space<vmem>>, vector<288x25xbf16>
    %cst = arith.constant dense<0.000000e+00> : vector<288x10xf32>
    %2 = tpu.matmul %1, %0, %cst {dimension_numbers = #tpu.dot_dimension_numbers<[1], [0], [0], [1], [0, 0, 1, 1], [], []>} : vector<288x25xbf16>, vector<25x10xbf16>, vector<288x10xf32> -> vector<288x10xf32>
    %c0_3 = arith.constant 0 : index
    %c0_4 = arith.constant 0 : index
    %3 = vector.load %arg2[%c0_3, %c0_4] : memref<288x25xbf16, #tpu.memory_space<vmem>>, vector<288x25xbf16>
    %cst_5 = arith.constant dense<0.000000e+00> : vector<288x10xf32>
    %4 = tpu.matmul %3, %0, %cst_5 {dimension_numbers = #tpu.dot_dimension_numbers<[1], [0], [0], [1], [0, 0, 1, 1], [], []>} : vector<288x25xbf16>, vector<25x10xbf16>, vector<288x10xf32> -> vector<288x10xf32>
    %c0_6 = arith.constant 0 : index
    %c0_7 = arith.constant 0 : index
    %5 = vector.load %arg3[%c0_6, %c0_7] : memref<288x25xbf16, #tpu.memory_space<vmem>>, vector<288x25xbf16>
    %cst_8 = arith.constant dense<0.000000e+00> : vector<288x10xf32>
    %6 = tpu.matmul %5, %0, %cst_8 {dimension_numbers = #tpu.dot_dimension_numbers<[1], [0], [0], [1], [0, 0, 1, 1], [], []>} : vector<288x25xbf16>, vector<25x10xbf16>, vector<288x10xf32> -> vector<288x10xf32>
    %c0_9 = arith.constant 0 : index
    %c0_10 = arith.constant 0 : index
    %7 = vector.load %arg4[%c0_9, %c0_10] : memref<288x25xbf16, #tpu.memory_space<vmem>>, vector<288x25xbf16>
    %cst_11 = arith.constant dense<0.000000e+00> : vector<288x10xf32>
    %8 = tpu.matmul %7, %0, %cst_11 {dimension_numbers = #tpu.dot_dimension_numbers<[1], [0], [0], [1], [0, 0, 1, 1], [], []>} : vector<288x25xbf16>, vector<25x10xbf16>, vector<288x10xf32> -> vector<288x10xf32>
    %9 = arith.maximumf %2, %4 : vector<288x10xf32>
    %10 = arith.maximumf %6, %8 : vector<288x10xf32>
    %11 = arith.maximumf %9, %10 : vector<288x10xf32>
    %c0_12 = arith.constant 0 : index
    %c0_13 = arith.constant 0 : index
    %12 = vector.load %arg6[%c0_12, %c0_13] : memref<1x10xf32, #tpu.memory_space<vmem>>, vector<1x10xf32>
    %13 = vector.broadcast %12 : vector<1x10xf32> to vector<288x10xf32>
    %14 = arith.addf %11, %13 : vector<288x10xf32>
    %cst_14 = arith.constant 0.000000e+00 : f32
    %15 = vector.broadcast %cst_14 : f32 to vector<288x10xf32>
    %16 = arith.maximumf %14, %15 : vector<288x10xf32>
    %17 = arith.truncf %16 : vector<288x10xf32> to vector<288x10xbf16>
    %c0_15 = arith.constant 0 : index
    %c0_16 = arith.constant 0 : index
    %18 = vector.load %arg7[%c0_15, %c0_16] : memref<288x10xbf16, #tpu.memory_space<vmem>>, vector<288x10xbf16>
    tpu.vector_store %arg7[%c0_15, %c0_16], %17 {strides = array<i32>} : memref<288x10xbf16, #tpu.memory_space<vmem>>, vector<288x10xbf16>,
    return
  }
  func.func @transform_0(%arg0: i32) -> (i32, i32) {
    %c0_i32 = arith.constant 0 : i32
    %c0_i32_0 = arith.constant 0 : i32
    return %arg0, %c0_i32 : i32, i32
  }
  func.func @transform_1(%arg0: i32) -> (i32, i32) {
    %c0_i32 = arith.constant 0 : i32
    %c0_i32_0 = arith.constant 0 : i32
    return %arg0, %c0_i32 : i32, i32
  }
  func.func @transform_2(%arg0: i32) -> (i32, i32) {
    %c0_i32 = arith.constant 0 : i32
    %c0_i32_0 = arith.constant 0 : i32
    return %arg0, %c0_i32 : i32, i32
  }
  func.func @transform_3(%arg0: i32) -> (i32, i32) {
    %c0_i32 = arith.constant 0 : i32
    %c0_i32_0 = arith.constant 0 : i32
    return %arg0, %c0_i32 : i32, i32
  }
  func.func @transform_4(%arg0: i32) -> (i32, i32) {
    %c0_i32 = arith.constant 0 : i32
    %c0_i32_0 = arith.constant 0 : i32
    %c0_i32_1 = arith.constant 0 : i32
    return %c0_i32, %c0_i32_0 : i32, i32
  }
  func.func @transform_5(%arg0: i32) -> (i32, i32) {
    %c0_i32 = arith.constant 0 : i32
    %c0_i32_0 = arith.constant 0 : i32
    %c0_i32_1 = arith.constant 0 : i32
    return %c0_i32, %c0_i32_0 : i32, i32
  }
  func.func @transform_6(%arg0: i32) -> (i32, i32) {
    %c0_i32 = arith.constant 0 : i32
    %c0_i32_0 = arith.constant 0 : i32
    return %arg0, %c0_i32 : i32, i32
  }
}

module attributes {stable_mosaic.version = 11 : i64} {
  func.func @_conv_pool_relu_kernel(%arg0: i32, %arg1: memref<32x250xbf16, #tpu.memory_space<vmem>>, %arg2: memref<32x250xbf16, #tpu.memory_space<vmem>>, %arg3: memref<32x250xbf16, #tpu.memory_space<vmem>>, %arg4: memref<32x250xbf16, #tpu.memory_space<vmem>>, %arg5: memref<250x20xbf16, #tpu.memory_space<vmem>>, %arg6: memref<1x20xf32, #tpu.memory_space<vmem>>, %arg7: memref<32x20xbf16, #tpu.memory_space<vmem>>) attributes {dimension_semantics = [#tpu.dimension_semantics<parallel>], iteration_bounds = array<i64: 1>, scalar_prefetch = 0 : i64, scratch_operands = 0 : i64, tpu.core_type = #tpu.core_type<tc>, window_params = [{transform_indices = @transform_0, window_bounds = array<i64: 32, 250>}, {transform_indices = @transform_1, window_bounds = array<i64: 32, 250>}, {transform_indices = @transform_2, window_bounds = array<i64: 32, 250>}, {transform_indices = @transform_3, window_bounds = array<i64: 32, 250>}, {pipeline_mode = #tpu.pipeline_mode<synchronous>, transform_indices = @transform_4, window_bounds = array<i64: 250, 20>}, {pipeline_mode = #tpu.pipeline_mode<synchronous>, transform_indices = @transform_5, window_bounds = array<i64: 1, 20>}, {transform_indices = @transform_6, window_bounds = array<i64: 32, 20>}]} {
    %c0 = arith.constant 0 : index
    %c0_0 = arith.constant 0 : index
    %0 = vector.load %arg5[%c0, %c0_0] : memref<250x20xbf16, #tpu.memory_space<vmem>>, vector<250x20xbf16>
    %c0_1 = arith.constant 0 : index
    %c0_2 = arith.constant 0 : index
    %1 = vector.load %arg1[%c0_1, %c0_2] : memref<32x250xbf16, #tpu.memory_space<vmem>>, vector<32x250xbf16>
    %cst = arith.constant dense<0.000000e+00> : vector<32x20xf32>
    %2 = tpu.matmul %1, %0, %cst {dimension_numbers = #tpu.dot_dimension_numbers<[1], [0], [0], [1], [0, 0, 1, 1], [], []>} : vector<32x250xbf16>, vector<250x20xbf16>, vector<32x20xf32> -> vector<32x20xf32>
    %c0_3 = arith.constant 0 : index
    %c0_4 = arith.constant 0 : index
    %3 = vector.load %arg2[%c0_3, %c0_4] : memref<32x250xbf16, #tpu.memory_space<vmem>>, vector<32x250xbf16>
    %cst_5 = arith.constant dense<0.000000e+00> : vector<32x20xf32>
    %4 = tpu.matmul %3, %0, %cst_5 {dimension_numbers = #tpu.dot_dimension_numbers<[1], [0], [0], [1], [0, 0, 1, 1], [], []>} : vector<32x250xbf16>, vector<250x20xbf16>, vector<32x20xf32> -> vector<32x20xf32>
    %c0_6 = arith.constant 0 : index
    %c0_7 = arith.constant 0 : index
    %5 = vector.load %arg3[%c0_6, %c0_7] : memref<32x250xbf16, #tpu.memory_space<vmem>>, vector<32x250xbf16>
    %cst_8 = arith.constant dense<0.000000e+00> : vector<32x20xf32>
    %6 = tpu.matmul %5, %0, %cst_8 {dimension_numbers = #tpu.dot_dimension_numbers<[1], [0], [0], [1], [0, 0, 1, 1], [], []>} : vector<32x250xbf16>, vector<250x20xbf16>, vector<32x20xf32> -> vector<32x20xf32>
    %c0_9 = arith.constant 0 : index
    %c0_10 = arith.constant 0 : index
    %7 = vector.load %arg4[%c0_9, %c0_10] : memref<32x250xbf16, #tpu.memory_space<vmem>>, vector<32x250xbf16>
    %cst_11 = arith.constant dense<0.000000e+00> : vector<32x20xf32>
    %8 = tpu.matmul %7, %0, %cst_11 {dimension_numbers = #tpu.dot_dimension_numbers<[1], [0], [0], [1], [0, 0, 1, 1], [], []>} : vector<32x250xbf16>, vector<250x20xbf16>, vector<32x20xf32> -> vector<32x20xf32>
    %9 = arith.maximumf %2, %4 : vector<32x20xf32>
    %10 = arith.maximumf %6, %8 : vector<32x20xf32>
    %11 = arith.maximumf %9, %10 : vector<32x20xf32>
    %c0_12 = arith.constant 0 : index
    %c0_13 = arith.constant 0 : index
    %12 = vector.load %arg6[%c0_12, %c0_13] : memref<1x20xf32, #tpu.memory_space<vmem>>, vector<1x20xf32>
    %13 = vector.broadcast %12 : vector<1x20xf32> to vector<32x20xf32>
    %14 = arith.addf %11, %13 : vector<32x20xf32>
    %cst_14 = arith.constant 0.000000e+00 : f32
    %15 = vector.broadcast %cst_14 : f32 to vector<32x20xf32>
    %16 = arith.maximumf %14, %15 : vector<32x20xf32>
    %17 = arith.truncf %16 : vector<32x20xf32> to vector<32x20xbf16>
    %c0_15 = arith.constant 0 : index
    %c0_16 = arith.constant 0 : index
    %18 = vector.load %arg7[%c0_15, %c0_16] : memref<32x20xbf16, #tpu.memory_space<vmem>>, vector<32x20xbf16>
    tpu.vector_store %arg7[%c0_15, %c0_16], %17 {strides = array<i32>} : memref<32x20xbf16, #tpu.memory_space<vmem>>, vector<32x20xbf16>,
    return
  }
  func.func @transform_0(%arg0: i32) -> (i32, i32) {
    %c0_i32 = arith.constant 0 : i32
    %c0_i32_0 = arith.constant 0 : i32
    return %arg0, %c0_i32 : i32, i32
  }
  func.func @transform_1(%arg0: i32) -> (i32, i32) {
    %c0_i32 = arith.constant 0 : i32
    %c0_i32_0 = arith.constant 0 : i32
    return %arg0, %c0_i32 : i32, i32
  }
  func.func @transform_2(%arg0: i32) -> (i32, i32) {
    %c0_i32 = arith.constant 0 : i32
    %c0_i32_0 = arith.constant 0 : i32
    return %arg0, %c0_i32 : i32, i32
  }
  func.func @transform_3(%arg0: i32) -> (i32, i32) {
    %c0_i32 = arith.constant 0 : i32
    %c0_i32_0 = arith.constant 0 : i32
    return %arg0, %c0_i32 : i32, i32
  }
  func.func @transform_4(%arg0: i32) -> (i32, i32) {
    %c0_i32 = arith.constant 0 : i32
    %c0_i32_0 = arith.constant 0 : i32
    %c0_i32_1 = arith.constant 0 : i32
    return %c0_i32, %c0_i32_0 : i32, i32
  }
  func.func @transform_5(%arg0: i32) -> (i32, i32) {
    %c0_i32 = arith.constant 0 : i32
    %c0_i32_0 = arith.constant 0 : i32
    %c0_i32_1 = arith.constant 0 : i32
    return %c0_i32, %c0_i32_0 : i32, i32
  }
  func.func @transform_6(%arg0: i32) -> (i32, i32) {
    %c0_i32 = arith.constant 0 : i32
    %c0_i32_0 = arith.constant 0 : i32
    return %arg0, %c0_i32 : i32, i32
  }
}

module attributes {stable_mosaic.version = 11 : i64} {
  func.func @_fc_head_kernel(%arg0: i32, %arg1: memref<2x320xbf16, #tpu.memory_space<vmem>>, %arg2: memref<320x50xbf16, #tpu.memory_space<vmem>>, %arg3: memref<1x50xf32, #tpu.memory_space<vmem>>, %arg4: memref<50x10xbf16, #tpu.memory_space<vmem>>, %arg5: memref<1x10xf32, #tpu.memory_space<vmem>>, %arg6: memref<2x10xf32, #tpu.memory_space<vmem>>) attributes {dimension_semantics = [#tpu.dimension_semantics<parallel>], iteration_bounds = array<i64: 1>, scalar_prefetch = 0 : i64, scratch_operands = 0 : i64, tpu.core_type = #tpu.core_type<tc>, window_params = [{transform_indices = @transform_0, window_bounds = array<i64: 2, 320>}, {pipeline_mode = #tpu.pipeline_mode<synchronous>, transform_indices = @transform_1, window_bounds = array<i64: 320, 50>}, {pipeline_mode = #tpu.pipeline_mode<synchronous>, transform_indices = @transform_2, window_bounds = array<i64: 1, 50>}, {pipeline_mode = #tpu.pipeline_mode<synchronous>, transform_indices = @transform_3, window_bounds = array<i64: 50, 10>}, {pipeline_mode = #tpu.pipeline_mode<synchronous>, transform_indices = @transform_4, window_bounds = array<i64: 1, 10>}, {transform_indices = @transform_5, window_bounds = array<i64: 2, 10>}]} {
    %c0 = arith.constant 0 : index
    %c0_0 = arith.constant 0 : index
    %0 = vector.load %arg1[%c0, %c0_0] : memref<2x320xbf16, #tpu.memory_space<vmem>>, vector<2x320xbf16>
    %c0_1 = arith.constant 0 : index
    %c0_2 = arith.constant 0 : index
    %1 = vector.load %arg2[%c0_1, %c0_2] : memref<320x50xbf16, #tpu.memory_space<vmem>>, vector<320x50xbf16>
    %cst = arith.constant dense<0.000000e+00> : vector<2x50xf32>
    %2 = tpu.matmul %0, %1, %cst {dimension_numbers = #tpu.dot_dimension_numbers<[1], [0], [0], [1], [0, 0, 1, 1], [], []>} : vector<2x320xbf16>, vector<320x50xbf16>, vector<2x50xf32> -> vector<2x50xf32>
    %c0_3 = arith.constant 0 : index
    %c0_4 = arith.constant 0 : index
    %3 = vector.load %arg3[%c0_3, %c0_4] : memref<1x50xf32, #tpu.memory_space<vmem>>, vector<1x50xf32>
    %4 = vector.broadcast %3 : vector<1x50xf32> to vector<2x50xf32>
    %5 = arith.addf %2, %4 : vector<2x50xf32>
    %cst_5 = arith.constant 0.000000e+00 : f32
    %6 = vector.broadcast %cst_5 : f32 to vector<2x50xf32>
    %7 = arith.maximumf %5, %6 : vector<2x50xf32>
    %8 = arith.truncf %7 : vector<2x50xf32> to vector<2x50xbf16>
    %c0_6 = arith.constant 0 : index
    %c0_7 = arith.constant 0 : index
    %9 = vector.load %arg4[%c0_6, %c0_7] : memref<50x10xbf16, #tpu.memory_space<vmem>>, vector<50x10xbf16>
    %cst_8 = arith.constant dense<0.000000e+00> : vector<2x10xf32>
    %10 = tpu.matmul %8, %9, %cst_8 {dimension_numbers = #tpu.dot_dimension_numbers<[1], [0], [0], [1], [0, 0, 1, 1], [], []>} : vector<2x50xbf16>, vector<50x10xbf16>, vector<2x10xf32> -> vector<2x10xf32>
    %c0_9 = arith.constant 0 : index
    %c0_10 = arith.constant 0 : index
    %11 = vector.load %arg5[%c0_9, %c0_10] : memref<1x10xf32, #tpu.memory_space<vmem>>, vector<1x10xf32>
    %12 = vector.broadcast %11 : vector<1x10xf32> to vector<2x10xf32>
    %13 = arith.addf %10, %12 : vector<2x10xf32>
    %cst_11 = arith.constant dense<0xFF800000> : vector<2xf32>
    %14 = vector.multi_reduction <maximumf>, %13, %cst_11 [1] : vector<2x10xf32> to vector<2xf32>
    %15 = vector.shape_cast %14 : vector<2xf32> to vector<2x1xf32>
    %16 = vector.broadcast %15 : vector<2x1xf32> to vector<2x10xf32>
    %17 = arith.subf %13, %16 : vector<2x10xf32>
    %18 = math.exp %17 : vector<2x10xf32>
    %cst_12 = arith.constant dense<0.000000e+00> : vector<2xf32>
    %19 = vector.multi_reduction <add>, %18, %cst_12 [1] : vector<2x10xf32> to vector<2xf32>
    %20 = vector.shape_cast %19 : vector<2xf32> to vector<2x1xf32>
    %21 = math.log %20 : vector<2x1xf32>
    %22 = vector.broadcast %21 : vector<2x1xf32> to vector<2x10xf32>
    %23 = arith.subf %17, %22 : vector<2x10xf32>
    %c0_13 = arith.constant 0 : index
    %c0_14 = arith.constant 0 : index
    %24 = vector.load %arg6[%c0_13, %c0_14] : memref<2x10xf32, #tpu.memory_space<vmem>>, vector<2x10xf32>
    tpu.vector_store %arg6[%c0_13, %c0_14], %23 {strides = array<i32>} : memref<2x10xf32, #tpu.memory_space<vmem>>, vector<2x10xf32>,
    return
  }
  func.func @transform_0(%arg0: i32) -> (i32, i32) {
    %c0_i32 = arith.constant 0 : i32
    %c0_i32_0 = arith.constant 0 : i32
    return %arg0, %c0_i32 : i32, i32
  }
  func.func @transform_1(%arg0: i32) -> (i32, i32) {
    %c0_i32 = arith.constant 0 : i32
    %c0_i32_0 = arith.constant 0 : i32
    %c0_i32_1 = arith.constant 0 : i32
    return %c0_i32, %c0_i32_0 : i32, i32
  }
  func.func @transform_2(%arg0: i32) -> (i32, i32) {
    %c0_i32 = arith.constant 0 : i32
    %c0_i32_0 = arith.constant 0 : i32
    %c0_i32_1 = arith.constant 0 : i32
    return %c0_i32, %c0_i32_0 : i32, i32
  }
  func.func @transform_3(%arg0: i32) -> (i32, i32) {
    %c0_i32 = arith.constant 0 : i32
    %c0_i32_0 = arith.constant 0 : i32
    %c0_i32_1 = arith.constant 0 : i32
    return %c0_i32, %c0_i32_0 : i32, i32
  }
  func.func @transform_4(%arg0: i32) -> (i32, i32) {
    %c0_i32 = arith.constant 0 : i32
    %c0_i32_0 = arith.constant 0 : i32
    %c0_i32_1 = arith.constant 0 : i32
    return %c0_i32, %c0_i32_0 : i32, i32
  }
  func.func @transform_5(%arg0: i32) -> (i32, i32) {
    %c0_i32 = arith.constant 0 : i32
    %c0_i32_0 = arith.constant 0 : i32
    return %arg0, %c0_i32 : i32, i32
  }
}

</mosaic_0001>

<llo_original>
// kernel: cnn_forward.3
$region0: #{cnn_forward.3}
  #allocation0 [shape = 'u32[]', space=smem, size = 0x4, offset = 0x4, fixed_abs, tag = 'smem constant byte address 0x4 - core index']
  #allocation1 [shape = 'u32[144,128]{1,0:T(1,128)}', space=vmem, size = 0x12000, scoped, tag = 'internal scratch']
  %s0 = inlined_call_operand.vmem [shape: bf16[288,25], index: 0, kind: input, shape index: {}]
  %s1 = inlined_call_operand.vmem [shape: bf16[288,25], index: 1, kind: input, shape index: {}]
  %s2 = inlined_call_operand.vmem [shape: bf16[288,25], index: 2, kind: input, shape index: {}]
  %s3 = inlined_call_operand.vmem [shape: bf16[288,25], index: 3, kind: input, shape index: {}]
  %s4 = inlined_call_operand.vmem [shape: bf16[25,10], index: 4, kind: input, shape index: {}]
  %s5 = inlined_call_operand.vmem [shape: f32[1,10], index: 5, kind: input, shape index: {}]
  %s6 = inlined_call_operand.vmem [shape: bf16[288,10], index: 6, kind: output, shape index: {}]
  %s7 = sld [smem:[#allocation0]]
  $region34: #{cnn_forward.3} parent=0
    _
  %s9 = ssub.s32 1, %s7
  %s10 = scalar_select 0, %s9, %s7
  // Predicated region
  $region2: #{cnn_forward.3} parent=0 // pred_check
    _
  $region3: #{cnn_forward.3} parent=0 // pred_check_branch
    %12 = sbr.rel (0) target = $region5
  $region4: #{cnn_forward.3} parent=0 // pred_region
    _
  $region5: #{cnn_forward.3} parent=0 // pred_fallthru
    _
  // Predicated region
  $region6: #{cnn_forward.3} parent=0 // pred_check
    _
  $region7: #{cnn_forward.3} parent=0 // pred_check_branch
    %14 = sbr.rel (0) target = $region9
  $region8: #{cnn_forward.3} parent=0 // pred_region
    _
  $region9: #{cnn_forward.3} parent=0 // pred_fallthru
    _
  // Predicated region
  $region10: #{cnn_forward.3} parent=0 // pred_check
    _
  $region11: #{cnn_forward.3} parent=0 // pred_check_branch
    %16 = sbr.rel (0) target = $region13
  $region12: #{cnn_forward.3} parent=0 // pred_region
    _
  $region13: #{cnn_forward.3} parent=0 // pred_fallthru
    _
  // Predicated region
  $region14: #{cnn_forward.3} parent=0 // pred_check
    _
  $region15: #{cnn_forward.3} parent=0 // pred_check_branch
    %18 = sbr.rel (0) target = $region17
  $region16: #{cnn_forward.3} parent=0 // pred_region
    _
  $region17: #{cnn_forward.3} parent=0 // pred_fallthru
    _
  // Predicated region
  $region18: #{cnn_forward.3} parent=0 // pred_check
    _
  $region19: #{cnn_forward.3} parent=0 // pred_check_branch
    %20 = sbr.rel (0) target = $region21
  $region20: #{cnn_forward.3} parent=0 // pred_region
    _
  $region21: #{cnn_forward.3} parent=0 // pred_fallthru
    _
  // Predicated region
  $region22: #{cnn_forward.3} parent=0 // pred_check
    _
  $region23: #{cnn_forward.3} parent=0 // pred_check_branch
    %22 = sbr.rel (0) target = $region25
  $region24: #{cnn_forward.3} parent=0 // pred_region
    _
  $region25: #{cnn_forward.3} parent=0 // pred_fallthru
    _
  %v24 = vld [vmem:[%s4] sm:$0xf]
  %v25 = vld [vmem:[%s4 + $0x4] sm:$0xf]
  %v26 = vld [vmem:[%s4 + $0x8] sm:$0xf]
  %v27 = vld [vmem:[%s4 + $0xc] sm:$0x1]
  %v28 = vld [vmem:[%s0] sm:$0xf]
  %v29 = vld [vmem:[%s0 + $0x4] sm:$0xf]
  %v30 = vld [vmem:[%s0 + $0x8] sm:$0xf]
  %v31 = vld [vmem:[%s0 + $0xc] sm:$0xf]
  %v32 = vld [vmem:[%s0 + $0x10] sm:$0xf]
  %v33 = vld [vmem:[%s0 + $0x14] sm:$0xf]
  %v34 = vld [vmem:[%s0 + $0x18] sm:$0xf]
  %v35 = vld [vmem:[%s0 + $0x1c] sm:$0xf]
  %v36 = vld [vmem:[%s0 + $0x20] sm:$0xf]
  %v37 = vld [vmem:[%s0 + $0x24] sm:$0xf]
  %v38 = vld [vmem:[%s0 + $0x28] sm:$0xf]
  %v39 = vld [vmem:[%s0 + $0x2c] sm:$0xf]
  %v40 = vld [vmem:[%s0 + $0x30] sm:$0xf]
  %v41 = vld [vmem:[%s0 + $0x34] sm:$0xf]
  %v42 = vld [vmem:[%s0 + $0x38] sm:$0xf]
  %v43 = vld [vmem:[%s0 + $0x3c] sm:$0xf]
  %v44 = vld [vmem:[%s0 + $0x40] sm:$0xf]
  %v45 = vld [vmem:[%s0 + $0x44] sm:$0xf]
  %v46 = vld [vmem:[%s0 + $0x48] sm:$0xf]
  %v47 = vld [vmem:[%s0 + $0x4c] sm:$0xf]
  %v48 = vld [vmem:[%s0 + $0x50] sm:$0xf]
  %v49 = vld [vmem:[%s0 + $0x54] sm:$0xf]
  %v50 = vld [vmem:[%s0 + $0x58] sm:$0xf]
  %v51 = vld [vmem:[%s0 + $0x5c] sm:$0xf]
  %v52 = vld [vmem:[%s0 + $0x60] sm:$0xf]
  %v53 = vld [vmem:[%s0 + $0x64] sm:$0xf]
  %v54 = vld [vmem:[%s0 + $0x68] sm:$0xf]
  %v55 = vld [vmem:[%s0 + $0x6c] sm:$0xf]
  %v56 = vld [vmem:[%s0 + $0x70] sm:$0xf]
  %v57 = vld [vmem:[%s0 + $0x74] sm:$0xf]
  %v58 = vld [vmem:[%s0 + $0x78] sm:$0xf]
  %v59 = vld [vmem:[%s0 + $0x7c] sm:$0xf]
  %v60 = vld [vmem:[%s0 + $0x80] sm:$0xf]
  %v61 = vld [vmem:[%s0 + $0x84] sm:$0xf]
  %v62 = vld [vmem:[%s0 + $0x88] sm:$0xf]
  %v63 = vld [vmem:[%s0 + $0x8c] sm:$0xf]
  %v100 = vunpack.c.l.b16 %v28
  %v101 = vunpack.c.l.b16 %v29
  %v102 = vunpack.c.l.b16 %v30
  %v103 = vunpack.c.l.b16 %v31
  %v104 = vunpack.c.l.b16 %v32
  %v105 = vunpack.c.l.b16 %v33
  %v106 = vunpack.c.l.b16 %v34
  %v107 = vunpack.c.l.b16 %v35
  %v108 = vunpack.c.l.b16 %v36
  %v109 = vunpack.c.l.b16 %v37
  %v110 = vunpack.c.l.b16 %v38
  %v111 = vunpack.c.l.b16 %v39
  %v112 = vunpack.c.l.b16 %v40
  %v113 = vunpack.c.l.b16 %v41
  %v114 = vunpack.c.l.b16 %v42
  %v115 = vunpack.c.l.b16 %v43
  %v116 = vunpack.c.l.b16 %v44
  %v117 = vunpack.c.l.b16 %v45
  %v118 = vunpack.c.l.b16 %v46
  %v119 = vunpack.c.l.b16 %v47
  %v120 = vunpack.c.l.b16 %v48
  %v121 = vunpack.c.l.b16 %v49
  %v122 = vunpack.c.l.b16 %v50
  %v123 = vunpack.c.l.b16 %v51
  %v124 = vunpack.c.l.b16 %v52
  %v125 = vunpack.c.l.b16 %v53
  %v126 = vunpack.c.l.b16 %v54
  %v127 = vunpack.c.l.b16 %v55
  %v128 = vunpack.c.l.b16 %v56
  %v129 = vunpack.c.l.b16 %v57
  %v130 = vunpack.c.l.b16 %v58
  %v131 = vunpack.c.l.b16 %v59
  %v132 = vunpack.c.l.b16 %v60
  %v133 = vunpack.c.l.b16 %v61
  %v134 = vunpack.c.l.b16 %v62
  %v135 = vunpack.c.l.b16 %v63
  %v136 = vpack.c.b16 %v101, %v100
  %v137 = vpack.c.b16 %v103, %v102
  %v138 = vpack.c.b16 %v105, %v104
  %v139 = vpack.c.b16 %v107, %v106
  %v140 = vpack.c.b16 %v109, %v108
  %v141 = vpack.c.b16 %v111, %v110
  %v142 = vpack.c.b16 %v113, %v112
  %v143 = vpack.c.b16 %v115, %v114
  %v144 = vpack.c.b16 %v117, %v116
  %v145 = vpack.c.b16 %v119, %v118
  %v146 = vpack.c.b16 %v121, %v120
  %v147 = vpack.c.b16 %v123, %v122
  %v148 = vpack.c.b16 %v125, %v124
  %v149 = vpack.c.b16 %v127, %v126
  %v150 = vpack.c.b16 %v129, %v128
  %v151 = vpack.c.b16 %v131, %v130
  %v152 = vpack.c.b16 %v133, %v132
  %v153 = vpack.c.b16 %v135, %v134
  %v158 = vunpack.c.l.b16 %v24
  %v159 = vunpack.c.l.b16 %v25
  %v160 = vunpack.c.l.b16 %v26
  %v161 = vunpack.c.l.b16 %v27
  %v162 = vpack.c.b16 %v159, %v158
  %v163 = vpack.c.b16 %v161, %v160
  %vm165 = vcmask 203776
  %v167 = vsel %vm165, %v136, 0
  %v170 = vsel %vm165, %v137, 0
  %v173 = vsel %vm165, %v138, 0
  %v176 = vsel %vm165, %v139, 0
  %v179 = vsel %vm165, %v140, 0
  %v182 = vsel %vm165, %v141, 0
  %v185 = vsel %vm165, %v142, 0
  %v188 = vsel %vm165, %v143, 0
  %v191 = vsel %vm165, %v144, 0
  %v194 = vsel %vm165, %v145, 0
  %v197 = vsel %vm165, %v146, 0
  %v200 = vsel %vm165, %v147, 0
  %v203 = vsel %vm165, %v148, 0
  %v206 = vsel %vm165, %v149, 0
  %v209 = vsel %vm165, %v150, 0
  %v212 = vsel %vm165, %v151, 0
  %v215 = vsel %vm165, %v152, 0
  %v218 = vsel %vm165, %v153, 0
  %vm220 = vcmask 1043456
  %vm221 = vcmask 1044480
  %v222 = vsel %vm220, 4294967295, 65535
  %v223 = vsel %vm221, %v222, 0
  %v225 = vand.u32 %v163, %v223
  %227 = vmatprep.subr.bf16.mxu0 0
  %228 = vmatpush1.bf16.msra.mxu0 %v162
  %229 = vmatprep.subr.bf16.mxu0 0
  %230 = vmatpush1.bf16.msra.mxu0 %v225
  %231 = vmatprep.subr.bf16.mxu0 0
  %232 = vmatpush1.bf16.msra.mxu0 0
  %233 = vmatprep.subr.bf16.mxu0 0
  %234 = vmatpush1.bf16.msra.mxu0 0
  %235 = vmatprep.subr.bf16.mxu0 0
  %236 = vmatpush1.bf16.msra.mxu0 0
  %237 = vmatprep.subr.bf16.mxu0 0
  %238 = vmatpush1.bf16.msra.mxu0 0
  %239 = vmatprep.subr.bf16.mxu0 0
  %240 = vmatpush1.bf16.msra.mxu0 0
  %241 = vmatprep.subr.bf16.mxu0 0
  %242 = vmatpush1.bf16.msra.mxu0 0
  %243 = vmatprep.subr.bf16.mxu0 0
  %244 = vmatpush1.bf16.msra.mxu0 0
  %245 = vmatprep.subr.bf16.mxu0 0
  %246 = vmatpush1.bf16.msra.mxu0 0
  %247 = vmatprep.subr.bf16.mxu0 0
  %248 = vmatpush1.bf16.msra.mxu0 0
  %249 = vmatprep.subr.bf16.mxu0 0
  %250 = vmatpush1.bf16.msra.mxu0 0
  %251 = vmatprep.subr.bf16.mxu0 0
  %252 = vmatpush1.bf16.msra.mxu0 0
  %253 = vmatprep.subr.bf16.mxu0 0
  %254 = vmatpush1.bf16.msra.mxu0 0
  %255 = vmatprep.subr.bf16.mxu0 0
  %256 = vmatpush1.bf16.msra.mxu0 0
  %257 = vmatprep.subr.bf16.mxu0 0
  %258 = vmatpush1.bf16.msra.mxu0 0
  %259 = vmatprep.mubr.bf16.mxu0 0
  %260 = vmatmul.mubr.bf16.gmra.mrb[0].mxu0 %v167
  %v261 = vpop.f32.mrb[0].mxu0
  %v262 = vadd.f32 0.0, %v261
  %v263 = vpop.f32.mrb[0].mxu0
  %v264 = vpop.f32.mrb[0].mxu0
  %v265 = vadd.f32 0.0, %v264
  %v266 = vpop.f32.mrb[0].mxu0
  %267 = vmatprep.mubr.bf16.mxu0 0
  %268 = vmatmul.mubr.bf16.gmra.mrb[0].mxu0 %v170
  %v269 = vpop.f32.mrb[0].mxu0
  %v270 = vadd.f32 0.0, %v269
  %v271 = vpop.f32.mrb[0].mxu0
  %v272 = vpop.f32.mrb[0].mxu0
  %v273 = vadd.f32 0.0, %v272
  %v274 = vpop.f32.mrb[0].mxu0
  %275 = vmatprep.mubr.bf16.mxu0 0
  %276 = vmatmul.mubr.bf16.gmra.mrb[0].mxu0 %v173
  %v277 = vpop.f32.mrb[0].mxu0
  %v278 = vadd.f32 0.0, %v277
  %v279 = vpop.f32.mrb[0].mxu0
  %v280 = vpop.f32.mrb[0].mxu0
  %v281 = vadd.f32 0.0, %v280
  %v282 = vpop.f32.mrb[0].mxu0
  %283 = vmatprep.mubr.bf16.mxu0 0
  %284 = vmatmul.mubr.bf16.gmra.mrb[0].mxu0 %v176
  %v285 = vpop.f32.mrb[0].mxu0
  %v286 = vadd.f32 0.0, %v285
  %v287 = vpop.f32.mrb[0].mxu0
  %v288 = vpop.f32.mrb[0].mxu0
  %v289 = vadd.f32 0.0, %v288
  %v290 = vpop.f32.mrb[0].mxu0
  %291 = vmatprep.mubr.bf16.mxu0 0
  %292 = vmatmul.mubr.bf16.gmra.mrb[0].mxu0 %v179
  %v293 = vpop.f32.mrb[0].mxu0
  %v294 = vadd.f32 0.0, %v293
  %v295 = vpop.f32.mrb[0].mxu0
  %v296 = vpop.f32.mrb[0].mxu0
  %v297 = vadd.f32 0.0, %v296
  %v298 = vpop.f32.mrb[0].mxu0
  %299 = vmatprep.mubr.bf16.mxu0 0
  %300 = vmatmul.mubr.bf16.gmra.mrb[0].mxu0 %v182
  %v301 = vpop.f32.mrb[0].mxu0
  %v302 = vadd.f32 0.0, %v301
  %v303 = vpop.f32.mrb[0].mxu0
  %v304 = vpop.f32.mrb[0].mxu0
  %v305 = vadd.f32 0.0, %v304
  %v306 = vpop.f32.mrb[0].mxu0
  %307 = vmatprep.mubr.bf16.mxu0 0
  %308 = vmatmul.mubr.bf16.gmra.mrb[0].mxu0 %v185
  %v309 = vpop.f32.mrb[0].mxu0
  %v310 = vadd.f32 0.0, %v309
  %v311 = vpop.f32.mrb[0].mxu0
  %v312 = vpop.f32.mrb[0].mxu0
  %v313 = vadd.f32 0.0, %v312
  %v314 = vpop.f32.mrb[0].mxu0
  %315 = vmatprep.mubr.bf16.mxu0 0
  %316 = vmatmul.mubr.bf16.gmra.mrb[0].mxu0 %v188
  %v317 = vpop.f32.mrb[0].mxu0
  %v318 = vadd.f32 0.0, %v317
  %v319 = vpop.f32.mrb[0].mxu0
  %v320 = vpop.f32.mrb[0].mxu0
  %v321 = vadd.f32 0.0, %v320
  %v322 = vpop.f32.mrb[0].mxu0
  %323 = vmatprep.mubr.bf16.mxu0 0
  %324 = vmatmul.mubr.bf16.gmra.mrb[0].mxu0 %v191
  %v325 = vpop.f32.mrb[0].mxu0
  %v326 = vadd.f32 0.0, %v325
  %v327 = vpop.f32.mrb[0].mxu0
  %v328 = vpop.f32.mrb[0].mxu0
  %v329 = vadd.f32 0.0, %v328
  %v330 = vpop.f32.mrb[0].mxu0
  %331 = vmatprep.mubr.bf16.mxu0 0
  %332 = vmatmul.mubr.bf16.gmra.mrb[0].mxu0 %v194
  %v333 = vpop.f32.mrb[0].mxu0
  %v334 = vadd.f32 0.0, %v333
  %v335 = vpop.f32.mrb[0].mxu0
  %v336 = vpop.f32.mrb[0].mxu0
  %v337 = vadd.f32 0.0, %v336
  %v338 = vpop.f32.mrb[0].mxu0
  %339 = vmatprep.mubr.bf16.mxu0 0
  %340 = vmatmul.mubr.bf16.gmra.mrb[0].mxu0 %v197
  %v341 = vpop.f32.mrb[0].mxu0
  %v342 = vadd.f32 0.0, %v341
  %v343 = vpop.f32.mrb[0].mxu0
  %v344 = vpop.f32.mrb[0].mxu0
  %v345 = vadd.f32 0.0, %v344
  %v346 = vpop.f32.mrb[0].mxu0
  %347 = vmatprep.mubr.bf16.mxu0 0
  %348 = vmatmul.mubr.bf16.gmra.mrb[0].mxu0 %v200
  %v349 = vpop.f32.mrb[0].mxu0
  %v350 = vadd.f32 0.0, %v349
  %v351 = vpop.f32.mrb[0].mxu0
  %v352 = vpop.f32.mrb[0].mxu0
  %v353 = vadd.f32 0.0, %v352
  %v354 = vpop.f32.mrb[0].mxu0
  %355 = vmatprep.mubr.bf16.mxu0 0
  %356 = vmatmul.mubr.bf16.gmra.mrb[0].mxu0 %v203
  %v357 = vpop.f32.mrb[0].mxu0
  %v358 = vadd.f32 0.0, %v357
  %v359 = vpop.f32.mrb[0].mxu0
  %v360 = vpop.f32.mrb[0].mxu0
  %v361 = vadd.f32 0.0, %v360
  %v362 = vpop.f32.mrb[0].mxu0
  %363 = vmatprep.mubr.bf16.mxu0 0
  %364 = vmatmul.mubr.bf16.gmra.mrb[0].mxu0 %v206
  %v365 = vpop.f32.mrb[0].mxu0
  %v366 = vadd.f32 0.0, %v365
  %v367 = vpop.f32.mrb[0].mxu0
  %v368 = vpop.f32.mrb[0].mxu0
  %v369 = vadd.f32 0.0, %v368
  %v370 = vpop.f32.mrb[0].mxu0
  %371 = vmatprep.mubr.bf16.mxu0 0
  %372 = vmatmul.mubr.bf16.gmra.mrb[0].mxu0 %v209
  %v373 = vpop.f32.mrb[0].mxu0
  %v374 = vadd.f32 0.0, %v373
  %v375 = vpop.f32.mrb[0].mxu0
  %v376 = vpop.f32.mrb[0].mxu0
  %v377 = vadd.f32 0.0, %v376
  %v378 = vpop.f32.mrb[0].mxu0
  %379 = vmatprep.mubr.bf16.mxu0 0
  %380 = vmatmul.mubr.bf16.gmra.mrb[0].mxu0 %v212
  %v381 = vpop.f32.mrb[0].mxu0
  %v382 = vadd.f32 0.0, %v381
  %v383 = vpop.f32.mrb[0].mxu0
  %v384 = vpop.f32.mrb[0].mxu0
  %v385 = vadd.f32 0.0, %v384
  %v386 = vpop.f32.mrb[0].mxu0
  %387 = vmatprep.mubr.bf16.mxu0 0
  %388 = vmatmul.mubr.bf16.gmra.mrb[0].mxu0 %v215
  %v389 = vpop.f32.mrb[0].mxu0
  %v390 = vadd.f32 0.0, %v389
  %v391 = vpop.f32.mrb[0].mxu0
  %v392 = vpop.f32.mrb[0].mxu0
  %v393 = vadd.f32 0.0, %v392
  %v394 = vpop.f32.mrb[0].mxu0
  %395 = vmatprep.mubr.bf16.mxu0 0
  %396 = vmatmul.mubr.bf16.gmra.mrb[0].mxu0 %v218
  %v397 = vpop.f32.mrb[0].mxu0
  %v398 = vadd.f32 0.0, %v397
  %v399 = vpop.f32.mrb[0].mxu0
  %v400 = vpop.f32.mrb[0].mxu0
  %v401 = vadd.f32 0.0, %v400
  %v402 = vpop.f32.mrb[0].mxu0
  %403 = vdwg.mxu0
  %v404 = vld [vmem:[%s1] sm:$0xf]
  %v405 = vld [vmem:[%s1 + $0x4] sm:$0xf]
  %v406 = vld [vmem:[%s1 + $0x8] sm:$0xf]
  %v407 = vld [vmem:[%s1 + $0xc] sm:$0xf]
  %v408 = vld [vmem:[%s1 + $0x10] sm:$0xf]
  %v409 = vld [vmem:[%s1 + $0x14] sm:$0xf]
  %v410 = vld [vmem:[%s1 + $0x18] sm:$0xf]
  %v411 = vld [vmem:[%s1 + $0x1c] sm:$0xf]
  %v412 = vld [vmem:[%s1 + $0x20] sm:$0xf]
  %v413 = vld [vmem:[%s1 + $0x24] sm:$0xf]
  %v414 = vld [vmem:[%s1 + $0x28] sm:$0xf]
  %v415 = vld [vmem:[%s1 + $0x2c] sm:$0xf]
  %v416 = vld [vmem:[%s1 + $0x30] sm:$0xf]
  %v417 = vld [vmem:[%s1 + $0x34] sm:$0xf]
  %v418 = vld [vmem:[%s1 + $0x38] sm:$0xf]
  %v419 = vld [vmem:[%s1 + $0x3c] sm:$0xf]
  %v420 = vld [vmem:[%s1 + $0x40] sm:$0xf]
  %v421 = vld [vmem:[%s1 + $0x44] sm:$0xf]
  %v422 = vld [vmem:[%s1 + $0x48] sm:$0xf]
  %v423 = vld [vmem:[%s1 + $0x4c] sm:$0xf]
  %v424 = vld [vmem:[%s1 + $0x50] sm:$0xf]
  %v425 = vld [vmem:[%s1 + $0x54] sm:$0xf]
  %v426 = vld [vmem:[%s1 + $0x58] sm:$0xf]
  %v427 = vld [vmem:[%s1 + $0x5c] sm:$0xf]
  %v428 = vld [vmem:[%s1 + $0x60] sm:$0xf]
  %v429 = vld [vmem:[%s1 + $0x64] sm:$0xf]
  %v430 = vld [vmem:[%s1 + $0x68] sm:$0xf]
  %v431 = vld [vmem:[%s1 + $0x6c] sm:$0xf]
  %v432 = vld [vmem:[%s1 + $0x70] sm:$0xf]
  %v433 = vld [vmem:[%s1 + $0x74] sm:$0xf]
  %v434 = vld [vmem:[%s1 + $0x78] sm:$0xf]
  %v435 = vld [vmem:[%s1 + $0x7c] sm:$0xf]
  %v436 = vld [vmem:[%s1 + $0x80] sm:$0xf]
  %v437 = vld [vmem:[%s1 + $0x84] sm:$0xf]
  %v438 = vld [vmem:[%s1 + $0x88] sm:$0xf]
  %v439 = vld [vmem:[%s1 + $0x8c] sm:$0xf]
  %v476 = vunpack.c.l.b16 %v404
  %v477 = vunpack.c.l.b16 %v405
  %v478 = vunpack.c.l.b16 %v406
  %v479 = vunpack.c.l.b16 %v407
  %v480 = vunpack.c.l.b16 %v408
  %v481 = vunpack.c.l.b16 %v409
  %v482 = vunpack.c.l.b16 %v410
  %v483 = vunpack.c.l.b16 %v411
  %v484 = vunpack.c.l.b16 %v412
  %v485 = vunpack.c.l.b16 %v413
  %v486 = vunpack.c.l.b16 %v414
  %v487 = vunpack.c.l.b16 %v415
  %v488 = vunpack.c.l.b16 %v416
  %v489 = vunpack.c.l.b16 %v417
  %v490 = vunpack.c.l.b16 %v418
  %v491 = vunpack.c.l.b16 %v419
  %v492 = vunpack.c.l.b16 %v420
  %v493 = vunpack.c.l.b16 %v421
  %v494 = vunpack.c.l.b16 %v422
  %v495 = vunpack.c.l.b16 %v423
  %v496 = vunpack.c.l.b16 %v424
  %v497 = vunpack.c.l.b16 %v425
  %v498 = vunpack.c.l.b16 %v426
  %v499 = vunpack.c.l.b16 %v427
  %v500 = vunpack.c.l.b16 %v428
  %v501 = vunpack.c.l.b16 %v429
  %v502 = vunpack.c.l.b16 %v430
  %v503 = vunpack.c.l.b16 %v431
  %v504 = vunpack.c.l.b16 %v432
  %v505 = vunpack.c.l.b16 %v433
  %v506 = vunpack.c.l.b16 %v434
  %v507 = vunpack.c.l.b16 %v435
  %v508 = vunpack.c.l.b16 %v436
  %v509 = vunpack.c.l.b16 %v437
  %v510 = vunpack.c.l.b16 %v438
  %v511 = vunpack.c.l.b16 %v439
  %v512 = vpack.c.b16 %v477, %v476
  %v513 = vpack.c.b16 %v479, %v478
  %v514 = vpack.c.b16 %v481, %v480
  %v515 = vpack.c.b16 %v483, %v482
  %v516 = vpack.c.b16 %v485, %v484
  %v517 = vpack.c.b16 %v487, %v486
  %v518 = vpack.c.b16 %v489, %v488
  %v519 = vpack.c.b16 %v491, %v490
  %v520 = vpack.c.b16 %v493, %v492
  %v521 = vpack.c.b16 %v495, %v494
  %v522 = vpack.c.b16 %v497, %v496
  %v523 = vpack.c.b16 %v499, %v498
  %v524 = vpack.c.b16 %v501, %v500
  %v525 = vpack.c.b16 %v503, %v502
  %v526 = vpack.c.b16 %v505, %v504
  %v527 = vpack.c.b16 %v507, %v506
  %v528 = vpack.c.b16 %v509, %v508
  %v529 = vpack.c.b16 %v511, %v510
  %v531 = vsel %vm165, %v512, 0
  %v534 = vsel %vm165, %v513, 0
  %v537 = vsel %vm165, %v514, 0
  %v540 = vsel %vm165, %v515, 0
  %v543 = vsel %vm165, %v516, 0
  %v546 = vsel %vm165, %v517, 0
  %v549 = vsel %vm165, %v518, 0
  %v552 = vsel %vm165, %v519, 0
  %v555 = vsel %vm165, %v520, 0
  %v558 = vsel %vm165, %v521, 0
  %v561 = vsel %vm165, %v522, 0
  %v564 = vsel %vm165, %v523, 0
  %v567 = vsel %vm165, %v524, 0
  %v570 = vsel %vm165, %v525, 0
  %v573 = vsel %vm165, %v526, 0
  %v576 = vsel %vm165, %v527, 0
  %v579 = vsel %vm165, %v528, 0
  %v582 = vsel %vm165, %v529, 0
  %584 = vmatprep.subr.bf16.mxu0 0
  %585 = vmatpush1.bf16.msra.mxu0 %v162
  %586 = vmatprep.subr.bf16.mxu0 0
  %587 = vmatpush1.bf16.msra.mxu0 %v225
  %588 = vmatprep.subr.bf16.mxu0 0
  %589 = vmatpush1.bf16.msra.mxu0 0
  %590 = vmatprep.subr.bf16.mxu0 0
  %591 = vmatpush1.bf16.msra.mxu0 0
  %592 = vmatprep.subr.bf16.mxu0 0
  %593 = vmatpush1.bf16.msra.mxu0 0
  %594 = vmatprep.subr.bf16.mxu0 0
  %595 = vmatpush1.bf16.msra.mxu0 0
  %596 = vmatprep.subr.bf16.mxu0 0
  %597 = vmatpush1.bf16.msra.mxu0 0
  %598 = vmatprep.subr.bf16.mxu0 0
  %599 = vmatpush1.bf16.msra.mxu0 0
  %600 = vmatprep.subr.bf16.mxu0 0
  %601 = vmatpush1.bf16.msra.mxu0 0
  %602 = vmatprep.subr.bf16.mxu0 0
  %603 = vmatpush1.bf16.msra.mxu0 0
  %604 = vmatprep.subr.bf16.mxu0 0
  %605 = vmatpush1.bf16.msra.mxu0 0
  %606 = vmatprep.subr.bf16.mxu0 0
  %607 = vmatpush1.bf16.msra.mxu0 0
  %608 = vmatprep.subr.bf16.mxu0 0
  %609 = vmatpush1.bf16.msra.mxu0 0
  %610 = vmatprep.subr.bf16.mxu0 0
  %611 = vmatpush1.bf16.msra.mxu0 0
  %612 = vmatprep.subr.bf16.mxu0 0
  %613 = vmatpush1.bf16.msra.mxu0 0
  %614 = vmatprep.subr.bf16.mxu0 0
  %615 = vmatpush1.bf16.msra.mxu0 0
  %616 = vmatprep.mubr.bf16.mxu0 0
  %617 = vmatmul.mubr.bf16.gmra.mrb[0].mxu0 %v531
  %v618 = vpop.f32.mrb[0].mxu0
  %v619 = vadd.f32 0.0, %v618
  %v620 = vpop.f32.mrb[0].mxu0
  %v621 = vpop.f32.mrb[0].mxu0
  %v622 = vadd.f32 0.0, %v621
  %v623 = vpop.f32.mrb[0].mxu0
  %624 = vmatprep.mubr.bf16.mxu0 0
  %625 = vmatmul.mubr.bf16.gmra.mrb[0].mxu0 %v534
  %v626 = vpop.f32.mrb[0].mxu0
  %v627 = vadd.f32 0.0, %v626
  %v628 = vpop.f32.mrb[0].mxu0
  %v629 = vpop.f32.mrb[0].mxu0
  %v630 = vadd.f32 0.0, %v629
  %v631 = vpop.f32.mrb[0].mxu0
  %632 = vmatprep.mubr.bf16.mxu0 0
  %633 = vmatmul.mubr.bf16.gmra.mrb[0].mxu0 %v537
  %v634 = vpop.f32.mrb[0].mxu0
  %v635 = vadd.f32 0.0, %v634
  %v636 = vpop.f32.mrb[0].mxu0
  %v637 = vpop.f32.mrb[0].mxu0
  %v638 = vadd.f32 0.0, %v637
  %v639 = vpop.f32.mrb[0].mxu0
  %640 = vmatprep.mubr.bf16.mxu0 0
  %641 = vmatmul.mubr.bf16.gmra.mrb[0].mxu0 %v540
  %v642 = vpop.f32.mrb[0].mxu0
  %v643 = vadd.f32 0.0, %v642
  %v644 = vpop.f32.mrb[0].mxu0
  %v645 = vpop.f32.mrb[0].mxu0
  %v646 = vadd.f32 0.0, %v645
  %v647 = vpop.f32.mrb[0].mxu0
  %648 = vmatprep.mubr.bf16.mxu0 0
  %649 = vmatmul.mubr.bf16.gmra.mrb[0].mxu0 %v543
  %v650 = vpop.f32.mrb[0].mxu0
  %v651 = vadd.f32 0.0, %v650
  %v652 = vpop.f32.mrb[0].mxu0
  %v653 = vpop.f32.mrb[0].mxu0
  %v654 = vadd.f32 0.0, %v653
  %v655 = vpop.f32.mrb[0].mxu0
  %656 = vmatprep.mubr.bf16.mxu0 0
  %657 = vmatmul.mubr.bf16.gmra.mrb[0].mxu0 %v546
  %v658 = vpop.f32.mrb[0].mxu0
  %v659 = vadd.f32 0.0, %v658
  %v660 = vpop.f32.mrb[0].mxu0
  %v661 = vpop.f32.mrb[0].mxu0
  %v662 = vadd.f32 0.0, %v661
  %v663 = vpop.f32.mrb[0].mxu0
  %664 = vmatprep.mubr.bf16.mxu0 0
  %665 = vmatmul.mubr.bf16.gmra.mrb[0].mxu0 %v549
  %v666 = vpop.f32.mrb[0].mxu0
  %v667 = vadd.f32 0.0, %v666
  %v668 = vpop.f32.mrb[0].mxu0
  %v669 = vpop.f32.mrb[0].mxu0
  %v670 = vadd.f32 0.0, %v669
  %v671 = vpop.f32.mrb[0].mxu0
  %672 = vmatprep.mubr.bf16.mxu0 0
  %673 = vmatmul.mubr.bf16.gmra.mrb[0].mxu0 %v552
  %v674 = vpop.f32.mrb[0].mxu0
  %v675 = vadd.f32 0.0, %v674
  %v676 = vpop.f32.mrb[0].mxu0
  %v677 = vpop.f32.mrb[0].mxu0
  %v678 = vadd.f32 0.0, %v677
  %v679 = vpop.f32.mrb[0].mxu0
  %680 = vmatprep.mubr.bf16.mxu0 0
  %681 = vmatmul.mubr.bf16.gmra.mrb[0].mxu0 %v555
  %v682 = vpop.f32.mrb[0].mxu0
  %v683 = vadd.f32 0.0, %v682
  %v684 = vpop.f32.mrb[0].mxu0
  %v685 = vpop.f32.mrb[0].mxu0
  %v686 = vadd.f32 0.0, %v685
  %v687 = vpop.f32.mrb[0].mxu0
  %688 = vmatprep.mubr.bf16.mxu0 0
  %689 = vmatmul.mubr.bf16.gmra.mrb[0].mxu0 %v558
  %v690 = vpop.f32.mrb[0].mxu0
  %v691 = vadd.f32 0.0, %v690
  %v692 = vpop.f32.mrb[0].mxu0
  %v693 = vpop.f32.mrb[0].mxu0
  %v694 = vadd.f32 0.0, %v693
  %v695 = vpop.f32.mrb[0].mxu0
  %696 = vmatprep.mubr.bf16.mxu0 0
  %697 = vmatmul.mubr.bf16.gmra.mrb[0].mxu0 %v561
  %v698 = vpop.f32.mrb[0].mxu0
  %v699 = vadd.f32 0.0, %v698
  %v700 = vpop.f32.mrb[0].mxu0
  %v701 = vpop.f32.mrb[0].mxu0
  %v702 = vadd.f32 0.0, %v701
  %v703 = vpop.f32.mrb[0].mxu0
  %704 = vmatprep.mubr.bf16.mxu0 0
  %705 = vmatmul.mubr.bf16.gmra.mrb[0].mxu0 %v564
  %v706 = vpop.f32.mrb[0].mxu0
  %v707 = vadd.f32 0.0, %v706
  %v708 = vpop.f32.mrb[0].mxu0
  %v709 = vpop.f32.mrb[0].mxu0
  %v710 = vadd.f32 0.0, %v709
  %v711 = vpop.f32.mrb[0].mxu0
  %712 = vmatprep.mubr.bf16.mxu0 0
  %713 = vmatmul.mubr.bf16.gmra.mrb[0].mxu0 %v567
  %v714 = vpop.f32.mrb[0].mxu0
  %v715 = vadd.f32 0.0, %v714
  %v716 = vpop.f32.mrb[0].mxu0
  %v717 = vpop.f32.mrb[0].mxu0
  %v718 = vadd.f32 0.0, %v717
  %v719 = vpop.f32.mrb[0].mxu0
  %720 = vmatprep.mubr.bf16.mxu0 0
  %721 = vmatmul.mubr.bf16.gmra.mrb[0].mxu0 %v570
  %v722 = vpop.f32.mrb[0].mxu0
  %v723 = vadd.f32 0.0, %v722
  %v724 = vpop.f32.mrb[0].mxu0
  %v725 = vpop.f32.mrb[0].mxu0
  %v726 = vadd.f32 0.0, %v725
  %v727 = vpop.f32.mrb[0].mxu0
  %728 = vmatprep.mubr.bf16.mxu0 0
  %729 = vmatmul.mubr.bf16.gmra.mrb[0].mxu0 %v573
  %v730 = vpop.f32.mrb[0].mxu0
  %v731 = vadd.f32 0.0, %v730
  %v732 = vpop.f32.mrb[0].mxu0
  %v733 = vpop.f32.mrb[0].mxu0
  %v734 = vadd.f32 0.0, %v733
  %v735 = vpop.f32.mrb[0].mxu0
  %736 = vmatprep.mubr.bf16.mxu0 0
  %737 = vmatmul.mubr.bf16.gmra.mrb[0].mxu0 %v576
  %v738 = vpop.f32.mrb[0].mxu0
  %v739 = vadd.f32 0.0, %v738
  %v740 = vpop.f32.mrb[0].mxu0
  %v741 = vpop.f32.mrb[0].mxu0
  %v742 = vadd.f32 0.0, %v741
  %v743 = vpop.f32.mrb[0].mxu0
  %744 = vmatprep.mubr.bf16.mxu0 0
  %745 = vmatmul.mubr.bf16.gmra.mrb[0].mxu0 %v579
  %v746 = vpop.f32.mrb[0].mxu0
  %v747 = vadd.f32 0.0, %v746
  %v748 = vpop.f32.mrb[0].mxu0
  %v749 = vpop.f32.mrb[0].mxu0
  %v750 = vadd.f32 0.0, %v749
  %v751 = vpop.f32.mrb[0].mxu0
  %752 = vmatprep.mubr.bf16.mxu0 0
  %753 = vmatmul.mubr.bf16.gmra.mrb[0].mxu0 %v582
  %v754 = vpop.f32.mrb[0].mxu0
  %v755 = vadd.f32 0.0, %v754
  %v756 = vpop.f32.mrb[0].mxu0
  %v757 = vpop.f32.mrb[0].mxu0
  %v758 = vadd.f32 0.0, %v757
  %v759 = vpop.f32.mrb[0].mxu0
  %760 = vdwg.mxu0
  %v761 = vld [vmem:[%s2] sm:$0xf]
  %v762 = vld [vmem:[%s2 + $0x4] sm:$0xf]
  %v763 = vld [vmem:[%s2 + $0x8] sm:$0xf]
  %v764 = vld [vmem:[%s2 + $0xc] sm:$0xf]
  %v765 = vld [vmem:[%s2 + $0x10] sm:$0xf]
  %v766 = vld [vmem:[%s2 + $0x14] sm:$0xf]
  %v767 = vld [vmem:[%s2 + $0x18] sm:$0xf]
  %v768 = vld [vmem:[%s2 + $0x1c] sm:$0xf]
  %v769 = vld [vmem:[%s2 + $0x20] sm:$0xf]
  %v770 = vld [vmem:[%s2 + $0x24] sm:$0xf]
  %v771 = vld [vmem:[%s2 + $0x28] sm:$0xf]
  %v772 = vld [vmem:[%s2 + $0x2c] sm:$0xf]
  %v773 = vld [vmem:[%s2 + $0x30] sm:$0xf]
  %v774 = vld [vmem:[%s2 + $0x34] sm:$0xf]
  %v775 = vld [vmem:[%s2 + $0x38] sm:$0xf]
  %v776 = vld [vmem:[%s2 + $0x3c] sm:$0xf]
  %v777 = vld [vmem:[%s2 + $0x40] sm:$0xf]
  %v778 = vld [vmem:[%s2 + $0x44] sm:$0xf]
  %v779 = vld [vmem:[%s2 + $0x48] sm:$0xf]
  %v780 = vld [vmem:[%s2 + $0x4c] sm:$0xf]
  %v781 = vld [vmem:[%s2 + $0x50] sm:$0xf]
  %v782 = vld [vmem:[%s2 + $0x54] sm:$0xf]
  %v783 = vld [vmem:[%s2 + $0x58] sm:$0xf]
  %v784 = vld [vmem:[%s2 + $0x5c] sm:$0xf]
  %v785 = vld [vmem:[%s2 + $0x60] sm:$0xf]
  %v786 = vld [vmem:[%s2 + $0x64] sm:$0xf]
  %v787 = vld [vmem:[%s2 + $0x68] sm:$0xf]
  %v788 = vld [vmem:[%s2 + $0x6c] sm:$0xf]
  %v789 = vld [vmem:[%s2 + $0x70] sm:$0xf]
  %v790 = vld [vmem:[%s2 + $0x74] sm:$0xf]
  %v791 = vld [vmem:[%s2 + $0x78] sm:$0xf]
  %v792 = vld [vmem:[%s2 + $0x7c] sm:$0xf]
  %v793 = vld [vmem:[%s2 + $0x80] sm:$0xf]
  %v794 = vld [vmem:[%s2 + $0x84] sm:$0xf]
  %v795 = vld [vmem:[%s2 + $0x88] sm:$0xf]
  %v796 = vld [vmem:[%s2 + $0x8c] sm:$0xf]
  %v833 = vunpack.c.l.b16 %v761
  %v834 = vunpack.c.l.b16 %v762
  %v835 = vunpack.c.l.b16 %v763
  %v836 = vunpack.c.l.b16 %v764
  %v837 = vunpack.c.l.b16 %v765
  %v838 = vunpack.c.l.b16 %v766
  %v839 = vunpack.c.l.b16 %v767
  %v840 = vunpack.c.l.b16 %v768
  %v841 = vunpack.c.l.b16 %v769
  %v842 = vunpack.c.l.b16 %v770
  %v843 = vunpack.c.l.b16 %v771
  %v844 = vunpack.c.l.b16 %v772
  %v845 = vunpack.c.l.b16 %v773
  %v846 = vunpack.c.l.b16 %v774
  %v847 = vunpack.c.l.b16 %v775
  %v848 = vunpack.c.l.b16 %v776
  %v849 = vunpack.c.l.b16 %v777
  %v850 = vunpack.c.l.b16 %v778
  %v851 = vunpack.c.l.b16 %v779
  %v852 = vunpack.c.l.b16 %v780
  %v853 = vunpack.c.l.b16 %v781
  %v854 = vunpack.c.l.b16 %v782
  %v855 = vunpack.c.l.b16 %v783
  %v856 = vunpack.c.l.b16 %v784
  %v857 = vunpack.c.l.b16 %v785
  %v858 = vunpack.c.l.b16 %v786
  %v859 = vunpack.c.l.b16 %v787
  %v860 = vunpack.c.l.b16 %v788
  %v861 = vunpack.c.l.b16 %v789
  %v862 = vunpack.c.l.b16 %v790
  %v863 = vunpack.c.l.b16 %v791
  %v864 = vunpack.c.l.b16 %v792
  %v865 = vunpack.c.l.b16 %v793
  %v866 = vunpack.c.l.b16 %v794
  %v867 = vunpack.c.l.b16 %v795
  %v868 = vunpack.c.l.b16 %v796
  %v869 = vpack.c.b16 %v834, %v833
  %v870 = vpack.c.b16 %v836, %v835
  %v871 = vpack.c.b16 %v838, %v837
  %v872 = vpack.c.b16 %v840, %v839
  %v873 = vpack.c.b16 %v842, %v841
  %v874 = vpack.c.b16 %v844, %v843
  %v875 = vpack.c.b16 %v846, %v845
  %v876 = vpack.c.b16 %v848, %v847
  %v877 = vpack.c.b16 %v850, %v849
  %v878 = vpack.c.b16 %v852, %v851
  %v879 = vpack.c.b16 %v854, %v853
  %v880 = vpack.c.b16 %v856, %v855
  %v881 = vpack.c.b16 %v858, %v857
  %v882 = vpack.c.b16 %v860, %v859
  %v883 = vpack.c.b16 %v862, %v861
  %v884 = vpack.c.b16 %v864, %v863
  %v885 = vpack.c.b16 %v866, %v865
  %v886 = vpack.c.b16 %v868, %v867
  %v888 = vsel %vm165, %v869, 0
  %v891 = vsel %vm165, %v870, 0
  %v894 = vsel %vm165, %v871, 0
  %v897 = vsel %vm165, %v872, 0
  %v900 = vsel %vm165, %v873, 0
  %v903 = vsel %vm165, %v874, 0
  %v906 = vsel %vm165, %v875, 0
  %v909 = vsel %vm165, %v876, 0
  %v912 = vsel %vm165, %v877, 0
  %v915 = vsel %vm165, %v878, 0
  %v918 = vsel %vm165, %v879, 0
  %v921 = vsel %vm165, %v880, 0
  %v924 = vsel %vm165, %v881, 0
  %v927 = vsel %vm165, %v882, 0
  %v930 = vsel %vm165, %v883, 0
  %v933 = vsel %vm165, %v884, 0
  %v936 = vsel %vm165, %v885, 0
  %v939 = vsel %vm165, %v886, 0
  %941 = vmatprep.subr.bf16.mxu0 0
  %942 = vmatpush1.bf16.msra.mxu0 %v162
  %943 = vmatprep.subr.bf16.mxu0 0
  %944 = vmatpush1.bf16.msra.mxu0 %v225
  %945 = vmatprep.subr.bf16.mxu0 0
  %946 = vmatpush1.bf16.msra.mxu0 0
  %947 = vmatprep.subr.bf16.mxu0 0
  %948 = vmatpush1.bf16.msra.mxu0 0
  %949 = vmatprep.subr.bf16.mxu0 0
  %950 = vmatpush1.bf16.msra.mxu0 0
  %951 = vmatprep.subr.bf16.mxu0 0
  %952 = vmatpush1.bf16.msra.mxu0 0
  %953 = vmatprep.subr.bf16.mxu0 0
  %954 = vmatpush1.bf16.msra.mxu0 0
  %955 = vmatprep.subr.bf16.mxu0 0
  %956 = vmatpush1.bf16.msra.mxu0 0
  %957 = vmatprep.subr.bf16.mxu0 0
  %958 = vmatpush1.bf16.msra.mxu0 0
  %959 = vmatprep.subr.bf16.mxu0 0
  %960 = vmatpush1.bf16.msra.mxu0 0
  %961 = vmatprep.subr.bf16.mxu0 0
  %962 = vmatpush1.bf16.msra.mxu0 0
  %963 = vmatprep.subr.bf16.mxu0 0
  %964 = vmatpush1.bf16.msra.mxu0 0
  %965 = vmatprep.subr.bf16.mxu0 0
  %966 = vmatpush1.bf16.msra.mxu0 0
  %967 = vmatprep.subr.bf16.mxu0 0
  %968 = vmatpush1.bf16.msra.mxu0 0
  %969 = vmatprep.subr.bf16.mxu0 0
  %970 = vmatpush1.bf16.msra.mxu0 0
  %971 = vmatprep.subr.bf16.mxu0 0
  %972 = vmatpush1.bf16.msra.mxu0 0
  %973 = vmatprep.mubr.bf16.mxu0 0
  %974 = vmatmul.mubr.bf16.gmra.mrb[0].mxu0 %v888
  %v975 = vpop.f32.mrb[0].mxu0
  %v976 = vadd.f32 0.0, %v975
  %v977 = vpop.f32.mrb[0].mxu0
  %v978 = vpop.f32.mrb[0].mxu0
  %v979 = vadd.f32 0.0, %v978
  %v980 = vpop.f32.mrb[0].mxu0
  %981 = vmatprep.mubr.bf16.mxu0 0
  %982 = vmatmul.mubr.bf16.gmra.mrb[0].mxu0 %v891
  %v983 = vpop.f32.mrb[0].mxu0
  %v984 = vadd.f32 0.0, %v983
  %v985 = vpop.f32.mrb[0].mxu0
  %v986 = vpop.f32.mrb[0].mxu0
  %v987 = vadd.f32 0.0, %v986
  %v988 = vpop.f32.mrb[0].mxu0
  %989 = vmatprep.mubr.bf16.mxu0 0
  %990 = vmatmul.mubr.bf16.gmra.mrb[0].mxu0 %v894
  %v991 = vpop.f32.mrb[0].mxu0
  %v992 = vadd.f32 0.0, %v991
  %v993 = vpop.f32.mrb[0].mxu0
  %v994 = vpop.f32.mrb[0].mxu0
  %v995 = vadd.f32 0.0, %v994
  %v996 = vpop.f32.mrb[0].mxu0
  %997 = vmatprep.mubr.bf16.mxu0 0
  %998 = vmatmul.mubr.bf16.gmra.mrb[0].mxu0 %v897
  %v999 = vpop.f32.mrb[0].mxu0
  %v1000 = vadd.f32 0.0, %v999
  %v1001 = vpop.f32.mrb[0].mxu0
  %v1002 = vpop.f32.mrb[0].mxu0
  %v1003 = vadd.f32 0.0, %v1002
  %v1004 = vpop.f32.mrb[0].mxu0
  %1005 = vmatprep.mubr.bf16.mxu0 0
  %1006 = vmatmul.mubr.bf16.gmra.mrb[0].mxu0 %v900
  %v1007 = vpop.f32.mrb[0].mxu0
  %v1008 = vadd.f32 0.0, %v1007
  %v1009 = vpop.f32.mrb[0].mxu0
  %v1010 = vpop.f32.mrb[0].mxu0
  %v1011 = vadd.f32 0.0, %v1010
  %v1012 = vpop.f32.mrb[0].mxu0
  %1013 = vmatprep.mubr.bf16.mxu0 0
  %1014 = vmatmul.mubr.bf16.gmra.mrb[0].mxu0 %v903
  %v1015 = vpop.f32.mrb[0].mxu0
  %v1016 = vadd.f32 0.0, %v1015
  %v1017 = vpop.f32.mrb[0].mxu0
  %v1018 = vpop.f32.mrb[0].mxu0
  %v1019 = vadd.f32 0.0, %v1018
  %v1020 = vpop.f32.mrb[0].mxu0
  %1021 = vmatprep.mubr.bf16.mxu0 0
  %1022 = vmatmul.mubr.bf16.gmra.mrb[0].mxu0 %v906
  %v1023 = vpop.f32.mrb[0].mxu0
  %v1024 = vadd.f32 0.0, %v1023
  %v1025 = vpop.f32.mrb[0].mxu0
  %v1026 = vpop.f32.mrb[0].mxu0
  %v1027 = vadd.f32 0.0, %v1026
  %v1028 = vpop.f32.mrb[0].mxu0
  %1029 = vmatprep.mubr.bf16.mxu0 0
  %1030 = vmatmul.mubr.bf16.gmra.mrb[0].mxu0 %v909
  %v1031 = vpop.f32.mrb[0].mxu0
  %v1032 = vadd.f32 0.0, %v1031
  %v1033 = vpop.f32.mrb[0].mxu0
  %v1034 = vpop.f32.mrb[0].mxu0
  %v1035 = vadd.f32 0.0, %v1034
  %v1036 = vpop.f32.mrb[0].mxu0
  %1037 = vmatprep.mubr.bf16.mxu0 0
  %1038 = vmatmul.mubr.bf16.gmra.mrb[0].mxu0 %v912
  %v1039 = vpop.f32.mrb[0].mxu0
  %v1040 = vadd.f32 0.0, %v1039
  %v1041 = vpop.f32.mrb[0].mxu0
  %v1042 = vpop.f32.mrb[0].mxu0
  %v1043 = vadd.f32 0.0, %v1042
  %v1044 = vpop.f32.mrb[0].mxu0
  %1045 = vmatprep.mubr.bf16.mxu0 0
  %1046 = vmatmul.mubr.bf16.gmra.mrb[0].mxu0 %v915
  %v1047 = vpop.f32.mrb[0].mxu0
  %v1048 = vadd.f32 0.0, %v1047
  %v1049 = vpop.f32.mrb[0].mxu0
  %v1050 = vpop.f32.mrb[0].mxu0
  %v1051 = vadd.f32 0.0, %v1050
  %v1052 = vpop.f32.mrb[0].mxu0
  %1053 = vmatprep.mubr.bf16.mxu0 0
  %1054 = vmatmul.mubr.bf16.gmra.mrb[0].mxu0 %v918
  %v1055 = vpop.f32.mrb[0].mxu0
  %v1056 = vadd.f32 0.0, %v1055
  %v1057 = vpop.f32.mrb[0].mxu0
  %v1058 = vpop.f32.mrb[0].mxu0
  %v1059 = vadd.f32 0.0, %v1058
  %v1060 = vpop.f32.mrb[0].mxu0
  %1061 = vmatprep.mubr.bf16.mxu0 0
  %1062 = vmatmul.mubr.bf16.gmra.mrb[0].mxu0 %v921
  %v1063 = vpop.f32.mrb[0].mxu0
  %v1064 = vadd.f32 0.0, %v1063
  %v1065 = vpop.f32.mrb[0].mxu0
  %v1066 = vpop.f32.mrb[0].mxu0
  %v1067 = vadd.f32 0.0, %v1066
  %v1068 = vpop.f32.mrb[0].mxu0
  %1069 = vmatprep.mubr.bf16.mxu0 0
  %1070 = vmatmul.mubr.bf16.gmra.mrb[0].mxu0 %v924
  %v1071 = vpop.f32.mrb[0].mxu0
  %v1072 = vadd.f32 0.0, %v1071
  %v1073 = vpop.f32.mrb[0].mxu0
  %v1074 = vpop.f32.mrb[0].mxu0
  %v1075 = vadd.f32 0.0, %v1074
  %v1076 = vpop.f32.mrb[0].mxu0
  %1077 = vmatprep.mubr.bf16.mxu0 0
  %1078 = vmatmul.mubr.bf16.gmra.mrb[0].mxu0 %v927
  %v1079 = vpop.f32.mrb[0].mxu0
  %v1080 = vadd.f32 0.0, %v1079
  %v1081 = vpop.f32.mrb[0].mxu0
  %v1082 = vpop.f32.mrb[0].mxu0
  %v1083 = vadd.f32 0.0, %v1082
  %v1084 = vpop.f32.mrb[0].mxu0
  %1085 = vmatprep.mubr.bf16.mxu0 0
  %1086 = vmatmul.mubr.bf16.gmra.mrb[0].mxu0 %v930
  %v1087 = vpop.f32.mrb[0].mxu0
  %v1088 = vadd.f32 0.0, %v1087
  %v1089 = vpop.f32.mrb[0].mxu0
  %v1090 = vpop.f32.mrb[0].mxu0
  %v1091 = vadd.f32 0.0, %v1090
  %v1092 = vpop.f32.mrb[0].mxu0
  %1093 = vmatprep.mubr.bf16.mxu0 0
  %1094 = vmatmul.mubr.bf16.gmra.mrb[0].mxu0 %v933
  %v1095 = vpop.f32.mrb[0].mxu0
  %v1096 = vadd.f32 0.0, %v1095
  %v1097 = vpop.f32.mrb[0].mxu0
  %v1098 = vpop.f32.mrb[0].mxu0
  %v1099 = vadd.f32 0.0, %v1098
  %v1100 = vpop.f32.mrb[0].mxu0
  %1101 = vmatprep.mubr.bf16.mxu0 0
  %1102 = vmatmul.mubr.bf16.gmra.mrb[0].mxu0 %v936
  %v1103 = vpop.f32.mrb[0].mxu0
  %v1104 = vadd.f32 0.0, %v1103
  %v1105 = vpop.f32.mrb[0].mxu0
  %v1106 = vpop.f32.mrb[0].mxu0
  %v1107 = vadd.f32 0.0, %v1106
  %v1108 = vpop.f32.mrb[0].mxu0
  %1109 = vmatprep.mubr.bf16.mxu0 0
  %1110 = vmatmul.mubr.bf16.gmra.mrb[0].mxu0 %v939
  %v1111 = vpop.f32.mrb[0].mxu0
  %v1112 = vadd.f32 0.0, %v1111
  %v1113 = vpop.f32.mrb[0].mxu0
  %v1114 = vpop.f32.mrb[0].mxu0
  %v1115 = vadd.f32 0.0, %v1114
  %v1116 = vpop.f32.mrb[0].mxu0
  %1117 = vdwg.mxu0
  %v1118 = vld [vmem:[%s3] sm:$0xf]
  %v1119 = vld [vmem:[%s3 + $0x4] sm:$0xf]
  %v1120 = vld [vmem:[%s3 + $0x8] sm:$0xf]
  %v1121 = vld [vmem:[%s3 + $0xc] sm:$0xf]
  %v1122 = vld [vmem:[%s3 + $0x10] sm:$0xf]
  %v1123 = vld [vmem:[%s3 + $0x14] sm:$0xf]
  %v1124 = vld [vmem:[%s3 + $0x18] sm:$0xf]
  %v1125 = vld [vmem:[%s3 + $0x1c] sm:$0xf]
  %v1126 = vld [vmem:[%s3 + $0x20] sm:$0xf]
  %v1127 = vld [vmem:[%s3 + $0x24] sm:$0xf]
  %v1128 = vld [vmem:[%s3 + $0x28] sm:$0xf]
  %v1129 = vld [vmem:[%s3 + $0x2c] sm:$0xf]
  %v1130 = vld [vmem:[%s3 + $0x30] sm:$0xf]
  %v1131 = vld [vmem:[%s3 + $0x34] sm:$0xf]
  %v1132 = vld [vmem:[%s3 + $0x38] sm:$0xf]
  %v1133 = vld [vmem:[%s3 + $0x3c] sm:$0xf]
  %v1134 = vld [vmem:[%s3 + $0x40] sm:$0xf]
  %v1135 = vld [vmem:[%s3 + $0x44] sm:$0xf]
  %v1136 = vld [vmem:[%s3 + $0x48] sm:$0xf]
  %v1137 = vld [vmem:[%s3 + $0x4c] sm:$0xf]
  %v1138 = vld [vmem:[%s3 + $0x50] sm:$0xf]
  %v1139 = vld [vmem:[%s3 + $0x54] sm:$0xf]
  %v1140 = vld [vmem:[%s3 + $0x58] sm:$0xf]
  %v1141 = vld [vmem:[%s3 + $0x5c] sm:$0xf]
  %v1142 = vld [vmem:[%s3 + $0x60] sm:$0xf]
  %v1143 = vld [vmem:[%s3 + $0x64] sm:$0xf]
  %v1144 = vld [vmem:[%s3 + $0x68] sm:$0xf]
  %v1145 = vld [vmem:[%s3 + $0x6c] sm:$0xf]
  %v1146 = vld [vmem:[%s3 + $0x70] sm:$0xf]
  %v1147 = vld [vmem:[%s3 + $0x74] sm:$0xf]
  %v1148 = vld [vmem:[%s3 + $0x78] sm:$0xf]
  %v1149 = vld [vmem:[%s3 + $0x7c] sm:$0xf]
  %v1150 = vld [vmem:[%s3 + $0x80] sm:$0xf]
  %v1151 = vld [vmem:[%s3 + $0x84] sm:$0xf]
  %v1152 = vld [vmem:[%s3 + $0x88] sm:$0xf]
  %v1153 = vld [vmem:[%s3 + $0x8c] sm:$0xf]
  %v1190 = vunpack.c.l.b16 %v1118
  %v1191 = vunpack.c.l.b16 %v1119
  %v1192 = vunpack.c.l.b16 %v1120
  %v1193 = vunpack.c.l.b16 %v1121
  %v1194 = vunpack.c.l.b16 %v1122
  %v1195 = vunpack.c.l.b16 %v1123
  %v1196 = vunpack.c.l.b16 %v1124
  %v1197 = vunpack.c.l.b16 %v1125
  %v1198 = vunpack.c.l.b16 %v1126
  %v1199 = vunpack.c.l.b16 %v1127
  %v1200 = vunpack.c.l.b16 %v1128
  %v1201 = vunpack.c.l.b16 %v1129
  %v1202 = vunpack.c.l.b16 %v1130
  %v1203 = vunpack.c.l.b16 %v1131
  %v1204 = vunpack.c.l.b16 %v1132
  %v1205 = vunpack.c.l.b16 %v1133
  %v1206 = vunpack.c.l.b16 %v1134
  %v1207 = vunpack.c.l.b16 %v1135
  %v1208 = vunpack.c.l.b16 %v1136
  %v1209 = vunpack.c.l.b16 %v1137
  %v1210 = vunpack.c.l.b16 %v1138
  %v1211 = vunpack.c.l.b16 %v1139
  %v1212 = vunpack.c.l.b16 %v1140
  %v1213 = vunpack.c.l.b16 %v1141
  %v1214 = vunpack.c.l.b16 %v1142
  %v1215 = vunpack.c.l.b16 %v1143
  %v1216 = vunpack.c.l.b16 %v1144
  %v1217 = vunpack.c.l.b16 %v1145
  %v1218 = vunpack.c.l.b16 %v1146
  %v1219 = vunpack.c.l.b16 %v1147
  %v1220 = vunpack.c.l.b16 %v1148
  %v1221 = vunpack.c.l.b16 %v1149
  %v1222 = vunpack.c.l.b16 %v1150
  %v1223 = vunpack.c.l.b16 %v1151
  %v1224 = vunpack.c.l.b16 %v1152
  %v1225 = vunpack.c.l.b16 %v1153
  %v1226 = vpack.c.b16 %v1191, %v1190
  %v1227 = vpack.c.b16 %v1193, %v1192
  %v1228 = vpack.c.b16 %v1195, %v1194
  %v1229 = vpack.c.b16 %v1197, %v1196
  %v1230 = vpack.c.b16 %v1199, %v1198
  %v1231 = vpack.c.b16 %v1201, %v1200
  %v1232 = vpack.c.b16 %v1203, %v1202
  %v1233 = vpack.c.b16 %v1205, %v1204
  %v1234 = vpack.c.b16 %v1207, %v1206
  %v1235 = vpack.c.b16 %v1209, %v1208
  %v1236 = vpack.c.b16 %v1211, %v1210
  %v1237 = vpack.c.b16 %v1213, %v1212
  %v1238 = vpack.c.b16 %v1215, %v1214
  %v1239 = vpack.c.b16 %v1217, %v1216
  %v1240 = vpack.c.b16 %v1219, %v1218
  %v1241 = vpack.c.b16 %v1221, %v1220
  %v1242 = vpack.c.b16 %v1223, %v1222
  %v1243 = vpack.c.b16 %v1225, %v1224
  %v1245 = vsel %vm165, %v1226, 0
  %v1248 = vsel %vm165, %v1227, 0
  %v1251 = vsel %vm165, %v1228, 0
  %v1254 = vsel %vm165, %v1229, 0
  %v1257 = vsel %vm165, %v1230, 0
  %v1260 = vsel %vm165, %v1231, 0
  %v1263 = vsel %vm165, %v1232, 0
  %v1266 = vsel %vm165, %v1233, 0
  %v1269 = vsel %vm165, %v1234, 0
  %v1272 = vsel %vm165, %v1235, 0
  %v1275 = vsel %vm165, %v1236, 0
  %v1278 = vsel %vm165, %v1237, 0
  %v1281 = vsel %vm165, %v1238, 0
  %v1284 = vsel %vm165, %v1239, 0
  %v1287 = vsel %vm165, %v1240, 0
  %v1290 = vsel %vm165, %v1241, 0
  %v1293 = vsel %vm165, %v1242, 0
  %v1296 = vsel %vm165, %v1243, 0
  %1298 = vmatprep.subr.bf16.mxu0 0
  %1299 = vmatpush1.bf16.msra.mxu0 %v162
  %1300 = vmatprep.subr.bf16.mxu0 0
  %1301 = vmatpush1.bf16.msra.mxu0 %v225
  %1302 = vmatprep.subr.bf16.mxu0 0
  %1303 = vmatpush1.bf16.msra.mxu0 0
  %1304 = vmatprep.subr.bf16.mxu0 0
  %1305 = vmatpush1.bf16.msra.mxu0 0
  %1306 = vmatprep.subr.bf16.mxu0 0
  %1307 = vmatpush1.bf16.msra.mxu0 0
  %1308 = vmatprep.subr.bf16.mxu0 0
  %1309 = vmatpush1.bf16.msra.mxu0 0
  %1310 = vmatprep.subr.bf16.mxu0 0
  %1311 = vmatpush1.bf16.msra.mxu0 0
  %1312 = vmatprep.subr.bf16.mxu0 0
  %1313 = vmatpush1.bf16.msra.mxu0 0
  %1314 = vmatprep.subr.bf16.mxu0 0
  %1315 = vmatpush1.bf16.msra.mxu0 0
  %1316 = vmatprep.subr.bf16.mxu0 0
  %1317 = vmatpush1.bf16.msra.mxu0 0
  %1318 = vmatprep.subr.bf16.mxu0 0
  %1319 = vmatpush1.bf16.msra.mxu0 0
  %1320 = vmatprep.subr.bf16.mxu0 0
  %1321 = vmatpush1.bf16.msra.mxu0 0
  %1322 = vmatprep.subr.bf16.mxu0 0
  %1323 = vmatpush1.bf16.msra.mxu0 0
  %1324 = vmatprep.subr.bf16.mxu0 0
  %1325 = vmatpush1.bf16.msra.mxu0 0
  %1326 = vmatprep.subr.bf16.mxu0 0
  %1327 = vmatpush1.bf16.msra.mxu0 0
  %1328 = vmatprep.subr.bf16.mxu0 0
  %1329 = vmatpush1.bf16.msra.mxu0 0
  %1330 = vmatprep.mubr.bf16.mxu0 0
  %1331 = vmatmul.mubr.bf16.gmra.mrb[0].mxu0 %v1245
  %v1332 = vpop.f32.mrb[0].mxu0
  %v1333 = vadd.f32 0.0, %v1332
  %v1334 = vpop.f32.mrb[0].mxu0
  %v1335 = vpop.f32.mrb[0].mxu0
  %v1336 = vadd.f32 0.0, %v1335
  %v1337 = vpop.f32.mrb[0].mxu0
  %1338 = vmatprep.mubr.bf16.mxu0 0
  %1339 = vmatmul.mubr.bf16.gmra.mrb[0].mxu0 %v1248
  %v1340 = vpop.f32.mrb[0].mxu0
  %v1341 = vadd.f32 0.0, %v1340
  %v1342 = vpop.f32.mrb[0].mxu0
  %v1343 = vpop.f32.mrb[0].mxu0
  %v1344 = vadd.f32 0.0, %v1343
  %v1345 = vpop.f32.mrb[0].mxu0
  %1346 = vmatprep.mubr.bf16.mxu0 0
  %1347 = vmatmul.mubr.bf16.gmra.mrb[0].mxu0 %v1251
  %v1348 = vpop.f32.mrb[0].mxu0
  %v1349 = vadd.f32 0.0, %v1348
  %v1350 = vpop.f32.mrb[0].mxu0
  %v1351 = vpop.f32.mrb[0].mxu0
  %v1352 = vadd.f32 0.0, %v1351
  %v1353 = vpop.f32.mrb[0].mxu0
  %1354 = vmatprep.mubr.bf16.mxu0 0
  %1355 = vmatmul.mubr.bf16.gmra.mrb[0].mxu0 %v1254
  %v1356 = vpop.f32.mrb[0].mxu0
  %v1357 = vadd.f32 0.0, %v1356
  %v1358 = vpop.f32.mrb[0].mxu0
  %v1359 = vpop.f32.mrb[0].mxu0
  %v1360 = vadd.f32 0.0, %v1359
  %v1361 = vpop.f32.mrb[0].mxu0
  %1362 = vmatprep.mubr.bf16.mxu0 0
  %1363 = vmatmul.mubr.bf16.gmra.mrb[0].mxu0 %v1257
  %v1364 = vpop.f32.mrb[0].mxu0
  %v1365 = vadd.f32 0.0, %v1364
  %v1366 = vpop.f32.mrb[0].mxu0
  %v1367 = vpop.f32.mrb[0].mxu0
  %v1368 = vadd.f32 0.0, %v1367
  %v1369 = vpop.f32.mrb[0].mxu0
  %1370 = vmatprep.mubr.bf16.mxu0 0
  %1371 = vmatmul.mubr.bf16.gmra.mrb[0].mxu0 %v1260
  %v1372 = vpop.f32.mrb[0].mxu0
  %v1373 = vadd.f32 0.0, %v1372
  %v1374 = vpop.f32.mrb[0].mxu0
  %v1375 = vpop.f32.mrb[0].mxu0
  %v1376 = vadd.f32 0.0, %v1375
  %v1377 = vpop.f32.mrb[0].mxu0
  %1378 = vmatprep.mubr.bf16.mxu0 0
  %1379 = vmatmul.mubr.bf16.gmra.mrb[0].mxu0 %v1263
  %v1380 = vpop.f32.mrb[0].mxu0
  %v1381 = vadd.f32 0.0, %v1380
  %v1382 = vpop.f32.mrb[0].mxu0
  %v1383 = vpop.f32.mrb[0].mxu0
  %v1384 = vadd.f32 0.0, %v1383
  %v1385 = vpop.f32.mrb[0].mxu0
  %1386 = vmatprep.mubr.bf16.mxu0 0
  %1387 = vmatmul.mubr.bf16.gmra.mrb[0].mxu0 %v1266
  %v1388 = vpop.f32.mrb[0].mxu0
  %v1389 = vadd.f32 0.0, %v1388
  %v1390 = vpop.f32.mrb[0].mxu0
  %v1391 = vpop.f32.mrb[0].mxu0
  %v1392 = vadd.f32 0.0, %v1391
  %v1393 = vpop.f32.mrb[0].mxu0
  %1394 = vmatprep.mubr.bf16.mxu0 0
  %1395 = vmatmul.mubr.bf16.gmra.mrb[0].mxu0 %v1269
  %v1396 = vpop.f32.mrb[0].mxu0
  %v1397 = vadd.f32 0.0, %v1396
  %v1398 = vpop.f32.mrb[0].mxu0
  %v1399 = vpop.f32.mrb[0].mxu0
  %v1400 = vadd.f32 0.0, %v1399
  %v1401 = vpop.f32.mrb[0].mxu0
  %1402 = vmatprep.mubr.bf16.mxu0 0
  %1403 = vmatmul.mubr.bf16.gmra.mrb[0].mxu0 %v1272
  %v1404 = vpop.f32.mrb[0].mxu0
  %v1405 = vadd.f32 0.0, %v1404
  %v1406 = vpop.f32.mrb[0].mxu0
  %v1407 = vpop.f32.mrb[0].mxu0
  %v1408 = vadd.f32 0.0, %v1407
  %v1409 = vpop.f32.mrb[0].mxu0
  %1410 = vmatprep.mubr.bf16.mxu0 0
  %1411 = vmatmul.mubr.bf16.gmra.mrb[0].mxu0 %v1275
  %v1412 = vpop.f32.mrb[0].mxu0
  %v1413 = vadd.f32 0.0, %v1412
  %v1414 = vpop.f32.mrb[0].mxu0
  %v1415 = vpop.f32.mrb[0].mxu0
  %v1416 = vadd.f32 0.0, %v1415
  %v1417 = vpop.f32.mrb[0].mxu0
  %1418 = vmatprep.mubr.bf16.mxu0 0
  %1419 = vmatmul.mubr.bf16.gmra.mrb[0].mxu0 %v1278
  %v1420 = vpop.f32.mrb[0].mxu0
  %v1421 = vadd.f32 0.0, %v1420
  %v1422 = vpop.f32.mrb[0].mxu0
  %v1423 = vpop.f32.mrb[0].mxu0
  %v1424 = vadd.f32 0.0, %v1423
  %v1425 = vpop.f32.mrb[0].mxu0
  %1426 = vmatprep.mubr.bf16.mxu0 0
  %1427 = vmatmul.mubr.bf16.gmra.mrb[0].mxu0 %v1281
  %v1428 = vpop.f32.mrb[0].mxu0
  %v1429 = vadd.f32 0.0, %v1428
  %v1430 = vpop.f32.mrb[0].mxu0
  %v1431 = vpop.f32.mrb[0].mxu0
  %v1432 = vadd.f32 0.0, %v1431
  %v1433 = vpop.f32.mrb[0].mxu0
  %1434 = vmatprep.mubr.bf16.mxu0 0
  %1435 = vmatmul.mubr.bf16.gmra.mrb[0].mxu0 %v1284
  %v1436 = vpop.f32.mrb[0].mxu0
  %v1437 = vadd.f32 0.0, %v1436
  %v1438 = vpop.f32.mrb[0].mxu0
  %v1439 = vpop.f32.mrb[0].mxu0
  %v1440 = vadd.f32 0.0, %v1439
  %v1441 = vpop.f32.mrb[0].mxu0
  %1442 = vmatprep.mubr.bf16.mxu0 0
  %1443 = vmatmul.mubr.bf16.gmra.mrb[0].mxu0 %v1287
  %v1444 = vpop.f32.mrb[0].mxu0
  %v1445 = vadd.f32 0.0, %v1444
  %v1446 = vpop.f32.mrb[0].mxu0
  %v1447 = vpop.f32.mrb[0].mxu0
  %v1448 = vadd.f32 0.0, %v1447
  %v1449 = vpop.f32.mrb[0].mxu0
  %1450 = vmatprep.mubr.bf16.mxu0 0
  %1451 = vmatmul.mubr.bf16.gmra.mrb[0].mxu0 %v1290
  %v1452 = vpop.f32.mrb[0].mxu0
  %v1453 = vadd.f32 0.0, %v1452
  %v1454 = vpop.f32.mrb[0].mxu0
  %v1455 = vpop.f32.mrb[0].mxu0
  %v1456 = vadd.f32 0.0, %v1455
  %v1457 = vpop.f32.mrb[0].mxu0
  %1458 = vmatprep.mubr.bf16.mxu0 0
  %1459 = vmatmul.mubr.bf16.gmra.mrb[0].mxu0 %v1293
  %v1460 = vpop.f32.mrb[0].mxu0
  %v1461 = vadd.f32 0.0, %v1460
  %v1462 = vpop.f32.mrb[0].mxu0
  %v1463 = vpop.f32.mrb[0].mxu0
  %v1464 = vadd.f32 0.0, %v1463
  %v1465 = vpop.f32.mrb[0].mxu0
  %1466 = vmatprep.mubr.bf16.mxu0 0
  %1467 = vmatmul.mubr.bf16.gmra.mrb[0].mxu0 %v1296
  %v1468 = vpop.f32.mrb[0].mxu0
  %v1469 = vadd.f32 0.0, %v1468
  %v1470 = vpop.f32.mrb[0].mxu0
  %v1471 = vpop.f32.mrb[0].mxu0
  %v1472 = vadd.f32 0.0, %v1471
  %v1473 = vpop.f32.mrb[0].mxu0
  %1474 = vdwg.mxu0
  %v1475 = vmax.f32 %v262, %v619
  %v1476 = vmax.f32 %v265, %v622
  %v1477 = vmax.f32 %v270, %v627
  %v1478 = vmax.f32 %v273, %v630
  %v1479 = vmax.f32 %v278, %v635
  %v1480 = vmax.f32 %v281, %v638
  %v1481 = vmax.f32 %v286, %v643
  %v1482 = vmax.f32 %v289, %v646
  %v1483 = vmax.f32 %v294, %v651
  %v1484 = vmax.f32 %v297, %v654
  %v1485 = vmax.f32 %v302, %v659
  %v1486 = vmax.f32 %v305, %v662
  %v1487 = vmax.f32 %v310, %v667
  %v1488 = vmax.f32 %v313, %v670
  %v1489 = vmax.f32 %v318, %v675
  %v1490 = vmax.f32 %v321, %v678
  %v1491 = vmax.f32 %v326, %v683
  %v1492 = vmax.f32 %v329, %v686
  %v1493 = vmax.f32 %v334, %v691
  %v1494 = vmax.f32 %v337, %v694
  %v1495 = vmax.f32 %v342, %v699
  %v1496 = vmax.f32 %v345, %v702
  %v1497 = vmax.f32 %v350, %v707
  %v1498 = vmax.f32 %v353, %v710
  %v1499 = vmax.f32 %v358, %v715
  %v1500 = vmax.f32 %v361, %v718
  %v1501 = vmax.f32 %v366, %v723
  %v1502 = vmax.f32 %v369, %v726
  %v1503 = vmax.f32 %v374, %v731
  %v1504 = vmax.f32 %v377, %v734
  %v1505 = vmax.f32 %v382, %v739
  %v1506 = vmax.f32 %v385, %v742
  %v1507 = vmax.f32 %v390, %v747
  %v1508 = vmax.f32 %v393, %v750
  %v1509 = vmax.f32 %v398, %v755
  %v1510 = vmax.f32 %v401, %v758
  %v1511 = vmax.f32 %v976, %v1333
  %v1512 = vmax.f32 %v979, %v1336
  %v1513 = vmax.f32 %v984, %v1341
  %v1514 = vmax.f32 %v987, %v1344
  %v1515 = vmax.f32 %v992, %v1349
  %v1516 = vmax.f32 %v995, %v1352
  %v1517 = vmax.f32 %v1000, %v1357
  %v1518 = vmax.f32 %v1003, %v1360
  %v1519 = vmax.f32 %v1008, %v1365
  %v1520 = vmax.f32 %v1011, %v1368
  %v1521 = vmax.f32 %v1016, %v1373
  %v1522 = vmax.f32 %v1019, %v1376
  %v1523 = vmax.f32 %v1024, %v1381
  %v1524 = vmax.f32 %v1027, %v1384
  %v1525 = vmax.f32 %v1032, %v1389
  %v1526 = vmax.f32 %v1035, %v1392
  %v1527 = vmax.f32 %v1040, %v1397
  %v1528 = vmax.f32 %v1043, %v1400
  %v1529 = vmax.f32 %v1048, %v1405
  %v1530 = vmax.f32 %v1051, %v1408
  %v1531 = vmax.f32 %v1056, %v1413
  %v1532 = vmax.f32 %v1059, %v1416
  %v1533 = vmax.f32 %v1064, %v1421
  %v1534 = vmax.f32 %v1067, %v1424
  %v1535 = vmax.f32 %v1072, %v1429
  %v1536 = vmax.f32 %v1075, %v1432
  %v1537 = vmax.f32 %v1080, %v1437
  %v1538 = vmax.f32 %v1083, %v1440
  %v1539 = vmax.f32 %v1088, %v1445
  %v1540 = vmax.f32 %v1091, %v1448
  %v1541 = vmax.f32 %v1096, %v1453
  %v1542 = vmax.f32 %v1099, %v1456
  %v1543 = vmax.f32 %v1104, %v1461
  %v1544 = vmax.f32 %v1107, %v1464
  %v1545 = vmax.f32 %v1112, %v1469
  %v1546 = vmax.f32 %v1115, %v1472
  %v1547 = vmax.f32 %v1475, %v1511
  %v1548 = vmax.f32 %v1476, %v1512
  %v1549 = vmax.f32 %v1477, %v1513
  %v1550 = vmax.f32 %v1478, %v1514
  %v1551 = vmax.f32 %v1479, %v1515
  %v1552 = vmax.f32 %v1480, %v1516
  %v1553 = vmax.f32 %v1481, %v1517
  %v1554 = vmax.f32 %v1482, %v1518
  %v1555 = vmax.f32 %v1483, %v1519
  %v1556 = vmax.f32 %v1484, %v1520
  %v1557 = vmax.f32 %v1485, %v1521
  %v1558 = vmax.f32 %v1486, %v1522
  %v1559 = vmax.f32 %v1487, %v1523
  %v1560 = vmax.f32 %v1488, %v1524
  %v1561 = vmax.f32 %v1489, %v1525
  %v1562 = vmax.f32 %v1490, %v1526
  %v1563 = vmax.f32 %v1491, %v1527
  %v1564 = vmax.f32 %v1492, %v1528
  %v1565 = vmax.f32 %v1493, %v1529
  %v1566 = vmax.f32 %v1494, %v1530
  %v1567 = vmax.f32 %v1495, %v1531
  %v1568 = vmax.f32 %v1496, %v1532
  %v1569 = vmax.f32 %v1497, %v1533
  %v1570 = vmax.f32 %v1498, %v1534
  %v1571 = vmax.f32 %v1499, %v1535
  %v1572 = vmax.f32 %v1500, %v1536
  %v1573 = vmax.f32 %v1501, %v1537
  %v1574 = vmax.f32 %v1502, %v1538
  %v1575 = vmax.f32 %v1503, %v1539
  %v1576 = vmax.f32 %v1504, %v1540
  %v1577 = vmax.f32 %v1505, %v1541
  %v1578 = vmax.f32 %v1506, %v1542
  %v1579 = vmax.f32 %v1507, %v1543
  %v1580 = vmax.f32 %v1508, %v1544
  %v1581 = vmax.f32 %v1509, %v1545
  %v1582 = vmax.f32 %v1510, %v1546
  %v1583 = vld [vmem:[%s5] sm:$0x1]
  %v1585 = vlaneseq
  %v1586 = vshrl.u32 %v1585, 7
  %v1587 = vsub.s32 0, %v1586
  %v1588 = vrot.slane %v1583, %v1587
  %v1590 = vadd.f32 %v1547, %v1588
  %v1591 = vadd.f32 %v1548, %v1588
  %v1592 = vadd.f32 %v1549, %v1588
  %v1593 = vadd.f32 %v1550, %v1588
  %v1594 = vadd.f32 %v1551, %v1588
  %v1595 = vadd.f32 %v1552, %v1588
  %v1596 = vadd.f32 %v1553, %v1588
  %v1597 = vadd.f32 %v1554, %v1588
  %v1598 = vadd.f32 %v1555, %v1588
  %v1599 = vadd.f32 %v1556, %v1588
  %v1600 = vadd.f32 %v1557, %v1588
  %v1601 = vadd.f32 %v1558, %v1588
  %v1602 = vadd.f32 %v1559, %v1588
  %v1603 = vadd.f32 %v1560, %v1588
  %v1604 = vadd.f32 %v1561, %v1588
  %v1605 = vadd.f32 %v1562, %v1588
  %v1606 = vadd.f32 %v1563, %v1588
  %v1607 = vadd.f32 %v1564, %v1588
  %v1608 = vadd.f32 %v1565, %v1588
  %v1609 = vadd.f32 %v1566, %v1588
  %v1610 = vadd.f32 %v1567, %v1588
  %v1611 = vadd.f32 %v1568, %v1588
  %v1612 = vadd.f32 %v1569, %v1588
  %v1613 = vadd.f32 %v1570, %v1588
  %v1614 = vadd.f32 %v1571, %v1588
  %v1615 = vadd.f32 %v1572, %v1588
  %v1616 = vadd.f32 %v1573, %v1588
  %v1617 = vadd.f32 %v1574, %v1588
  %v1618 = vadd.f32 %v1575, %v1588
  %v1619 = vadd.f32 %v1576, %v1588
  %v1620 = vadd.f32 %v1577, %v1588
  %v1621 = vadd.f32 %v1578, %v1588
  %v1622 = vadd.f32 %v1579, %v1588
  %v1623 = vadd.f32 %v1580, %v1588
  %v1624 = vadd.f32 %v1581, %v1588
  %v1625 = vadd.f32 %v1582, %v1588
  %v1626 = vmax.f32 %v1590, 0.0
  %v1627 = vmax.f32 %v1591, 0.0
  %v1628 = vmax.f32 %v1592, 0.0
  %v1629 = vmax.f32 %v1593, 0.0
  %v1630 = vmax.f32 %v1594, 0.0
  %v1631 = vmax.f32 %v1595, 0.0
  %v1632 = vmax.f32 %v1596, 0.0
  %v1633 = vmax.f32 %v1597, 0.0
  %v1634 = vmax.f32 %v1598, 0.0
  %v1635 = vmax.f32 %v1599, 0.0
  %v1636 = vmax.f32 %v1600, 0.0
  %v1637 = vmax.f32 %v1601, 0.0
  %v1638 = vmax.f32 %v1602, 0.0
  %v1639 = vmax.f32 %v1603, 0.0
  %v1640 = vmax.f32 %v1604, 0.0
  %v1641 = vmax.f32 %v1605, 0.0
  %v1642 = vmax.f32 %v1606, 0.0
  %v1643 = vmax.f32 %v1607, 0.0
  %v1644 = vmax.f32 %v1608, 0.0
  %v1645 = vmax.f32 %v1609, 0.0
  %v1646 = vmax.f32 %v1610, 0.0
  %v1647 = vmax.f32 %v1611, 0.0
  %v1648 = vmax.f32 %v1612, 0.0
  %v1649 = vmax.f32 %v1613, 0.0
  %v1650 = vmax.f32 %v1614, 0.0
  %v1651 = vmax.f32 %v1615, 0.0
  %v1652 = vmax.f32 %v1616, 0.0
  %v1653 = vmax.f32 %v1617, 0.0
  %v1654 = vmax.f32 %v1618, 0.0
  %v1655 = vmax.f32 %v1619, 0.0
  %v1656 = vmax.f32 %v1620, 0.0
  %v1657 = vmax.f32 %v1621, 0.0
  %v1658 = vmax.f32 %v1622, 0.0
  %v1659 = vmax.f32 %v1623, 0.0
  %v1660 = vmax.f32 %v1624, 0.0
  %v1661 = vmax.f32 %v1625, 0.0
  %v1662 = vpack.c.bf16 %v1627, %v1626
  %v1663 = vpack.c.bf16 %v1629, %v1628
  %v1664 = vpack.c.bf16 %v1631, %v1630
  %v1665 = vpack.c.bf16 %v1633, %v1632
  %v1666 = vpack.c.bf16 %v1635, %v1634
  %v1667 = vpack.c.bf16 %v1637, %v1636
  %v1668 = vpack.c.bf16 %v1639, %v1638
  %v1669 = vpack.c.bf16 %v1641, %v1640
  %v1670 = vpack.c.bf16 %v1643, %v1642
  %v1671 = vpack.c.bf16 %v1645, %v1644
  %v1672 = vpack.c.bf16 %v1647, %v1646
  %v1673 = vpack.c.bf16 %v1649, %v1648
  %v1674 = vpack.c.bf16 %v1651, %v1650
  %v1675 = vpack.c.bf16 %v1653, %v1652
  %v1676 = vpack.c.bf16 %v1655, %v1654
  %v1677 = vpack.c.bf16 %v1657, %v1656
  %v1678 = vpack.c.bf16 %v1659, %v1658
  %v1679 = vpack.c.bf16 %v1661, %v1660
  %v1698 = vunpack.c.l.b16 %v1662
  %v1699 = vunpack.c.h.b16 %v1662
  %v1700 = vunpack.c.l.b16 %v1663
  %v1701 = vunpack.c.h.b16 %v1663
  %v1702 = vunpack.c.l.b16 %v1664
  %v1703 = vunpack.c.h.b16 %v1664
  %v1704 = vunpack.c.l.b16 %v1665
  %v1705 = vunpack.c.h.b16 %v1665
  %v1706 = vunpack.c.l.b16 %v1666
  %v1707 = vunpack.c.h.b16 %v1666
  %v1708 = vunpack.c.l.b16 %v1667
  %v1709 = vunpack.c.h.b16 %v1667
  %v1710 = vunpack.c.l.b16 %v1668
  %v1711 = vunpack.c.h.b16 %v1668
  %v1712 = vunpack.c.l.b16 %v1669
  %v1713 = vunpack.c.h.b16 %v1669
  %v1714 = vunpack.c.l.b16 %v1670
  %v1715 = vunpack.c.h.b16 %v1670
  %v1716 = vunpack.c.l.b16 %v1671
  %v1717 = vunpack.c.h.b16 %v1671
  %v1718 = vunpack.c.l.b16 %v1672
  %v1719 = vunpack.c.h.b16 %v1672
  %v1720 = vunpack.c.l.b16 %v1673
  %v1721 = vunpack.c.h.b16 %v1673
  %v1722 = vunpack.c.l.b16 %v1674
  %v1723 = vunpack.c.h.b16 %v1674
  %v1724 = vunpack.c.l.b16 %v1675
  %v1725 = vunpack.c.h.b16 %v1675
  %v1726 = vunpack.c.l.b16 %v1676
  %v1727 = vunpack.c.h.b16 %v1676
  %v1728 = vunpack.c.l.b16 %v1677
  %v1729 = vunpack.c.h.b16 %v1677
  %v1730 = vunpack.c.l.b16 %v1678
  %v1731 = vunpack.c.h.b16 %v1678
  %v1732 = vunpack.c.l.b16 %v1679
  %v1733 = vunpack.c.h.b16 %v1679
  %v1734 = vpack.c.b16 %v1698, %v1698
  %v1735 = vpack.c.b16 %v1699, %v1699
  %v1736 = vpack.c.b16 %v1700, %v1700
  %v1737 = vpack.c.b16 %v1701, %v1701
  %v1738 = vpack.c.b16 %v1702, %v1702
  %v1739 = vpack.c.b16 %v1703, %v1703
  %v1740 = vpack.c.b16 %v1704, %v1704
  %v1741 = vpack.c.b16 %v1705, %v1705
  %v1742 = vpack.c.b16 %v1706, %v1706
  %v1743 = vpack.c.b16 %v1707, %v1707
  %v1744 = vpack.c.b16 %v1708, %v1708
  %v1745 = vpack.c.b16 %v1709, %v1709
  %v1746 = vpack.c.b16 %v1710, %v1710
  %v1747 = vpack.c.b16 %v1711, %v1711
  %v1748 = vpack.c.b16 %v1712, %v1712
  %v1749 = vpack.c.b16 %v1713, %v1713
  %v1750 = vpack.c.b16 %v1714, %v1714
  %v1751 = vpack.c.b16 %v1715, %v1715
  %v1752 = vpack.c.b16 %v1716, %v1716
  %v1753 = vpack.c.b16 %v1717, %v1717
  %v1754 = vpack.c.b16 %v1718, %v1718
  %v1755 = vpack.c.b16 %v1719, %v1719
  %v1756 = vpack.c.b16 %v1720, %v1720
  %v1757 = vpack.c.b16 %v1721, %v1721
  %v1758 = vpack.c.b16 %v1722, %v1722
  %v1759 = vpack.c.b16 %v1723, %v1723
  %v1760 = vpack.c.b16 %v1724, %v1724
  %v1761 = vpack.c.b16 %v1725, %v1725
  %v1762 = vpack.c.b16 %v1726, %v1726
  %v1763 = vpack.c.b16 %v1727, %v1727
  %v1764 = vpack.c.b16 %v1728, %v1728
  %v1765 = vpack.c.b16 %v1729, %v1729
  %v1766 = vpack.c.b16 %v1730, %v1730
  %v1767 = vpack.c.b16 %v1731, %v1731
  %v1768 = vpack.c.b16 %v1732, %v1732
  %v1769 = vpack.c.b16 %v1733, %v1733
  %vm1806 = vcmask 76800
  %1807 = vst.msk [vmem:[%s6] sm:$0xf] %vm1806, %v1734
  %1808 = vst.msk [vmem:[%s6 + $0x4] sm:$0xf] %vm1806, %v1735
  %1809 = vst.msk [vmem:[%s6 + $0x8] sm:$0xf] %vm1806, %v1736
  %1810 = vst.msk [vmem:[%s6 + $0xc] sm:$0xf] %vm1806, %v1737
  %1811 = vst.msk [vmem:[%s6 + $0x10] sm:$0xf] %vm1806, %v1738
  %1812 = vst.msk [vmem:[%s6 + $0x14] sm:$0xf] %vm1806, %v1739
  %1813 = vst.msk [vmem:[%s6 + $0x18] sm:$0xf] %vm1806, %v1740
  %1814 = vst.msk [vmem:[%s6 + $0x1c] sm:$0xf] %vm1806, %v1741
  %1815 = vst.msk [vmem:[%s6 + $0x20] sm:$0xf] %vm1806, %v1742
  %1816 = vst.msk [vmem:[%s6 + $0x24] sm:$0xf] %vm1806, %v1743
  %1817 = vst.msk [vmem:[%s6 + $0x28] sm:$0xf] %vm1806, %v1744
  %1818 = vst.msk [vmem:[%s6 + $0x2c] sm:$0xf] %vm1806, %v1745
  %1819 = vst.msk [vmem:[%s6 + $0x30] sm:$0xf] %vm1806, %v1746
  %1820 = vst.msk [vmem:[%s6 + $0x34] sm:$0xf] %vm1806, %v1747
  %1821 = vst.msk [vmem:[%s6 + $0x38] sm:$0xf] %vm1806, %v1748
  %1822 = vst.msk [vmem:[%s6 + $0x3c] sm:$0xf] %vm1806, %v1749
  %1823 = vst.msk [vmem:[%s6 + $0x40] sm:$0xf] %vm1806, %v1750
  %1824 = vst.msk [vmem:[%s6 + $0x44] sm:$0xf] %vm1806, %v1751
  %1825 = vst.msk [vmem:[%s6 + $0x48] sm:$0xf] %vm1806, %v1752
  %1826 = vst.msk [vmem:[%s6 + $0x4c] sm:$0xf] %vm1806, %v1753
  %1827 = vst.msk [vmem:[%s6 + $0x50] sm:$0xf] %vm1806, %v1754
  %1828 = vst.msk [vmem:[%s6 + $0x54] sm:$0xf] %vm1806, %v1755
  %1829 = vst.msk [vmem:[%s6 + $0x58] sm:$0xf] %vm1806, %v1756
  %1830 = vst.msk [vmem:[%s6 + $0x5c] sm:$0xf] %vm1806, %v1757
  %1831 = vst.msk [vmem:[%s6 + $0x60] sm:$0xf] %vm1806, %v1758
  %1832 = vst.msk [vmem:[%s6 + $0x64] sm:$0xf] %vm1806, %v1759
  %1833 = vst.msk [vmem:[%s6 + $0x68] sm:$0xf] %vm1806, %v1760
  %1834 = vst.msk [vmem:[%s6 + $0x6c] sm:$0xf] %vm1806, %v1761
  %1835 = vst.msk [vmem:[%s6 + $0x70] sm:$0xf] %vm1806, %v1762
  %1836 = vst.msk [vmem:[%s6 + $0x74] sm:$0xf] %vm1806, %v1763
  %1837 = vst.msk [vmem:[%s6 + $0x78] sm:$0xf] %vm1806, %v1764
  %1838 = vst.msk [vmem:[%s6 + $0x7c] sm:$0xf] %vm1806, %v1765
  %1839 = vst.msk [vmem:[%s6 + $0x80] sm:$0xf] %vm1806, %v1766
  %1840 = vst.msk [vmem:[%s6 + $0x84] sm:$0xf] %vm1806, %v1767
  %1841 = vst.msk [vmem:[%s6 + $0x88] sm:$0xf] %vm1806, %v1768
  %1842 = vst.msk [vmem:[%s6 + $0x8c] sm:$0xf] %vm1806, %v1769
  // Predicated region
  $region26: #{cnn_forward.3} parent=0 // pred_check
    _
  $region27: #{cnn_forward.3} parent=0 // pred_check_branch
    %1844 = sbr.rel (0) target = $region29
  $region28: #{cnn_forward.3} parent=0 // pred_region
    _
  $region29: #{cnn_forward.3} parent=0 // pred_fallthru
    _
  // Predicated region
  $region30: #{cnn_forward.3} parent=0 // pred_check
    _
  $region31: #{cnn_forward.3} parent=0 // pred_check_branch
    %1846 = sbr.rel (0) target = $region33
  $region32: #{cnn_forward.3} parent=0 // pred_region
    _
  $region33: #{cnn_forward.3} parent=0 // pred_fallthru
    _

// kernel: cnn_forward.4
$region0: #{cnn_forward.4}
  #allocation0 [shape = 'u32[]', space=smem, size = 0x4, offset = 0x4, fixed_abs, tag = 'smem constant byte address 0x4 - core index']
  #allocation1 [shape = 'u32[144,128]{1,0:T(1,128)}', space=vmem, size = 0x12000, scoped, tag = 'internal scratch']
  %s0 = inlined_call_operand.vmem [shape: bf16[32,250], index: 0, kind: input, shape index: {}]
  %s1 = inlined_call_operand.vmem [shape: bf16[32,250], index: 1, kind: input, shape index: {}]
  %s2 = inlined_call_operand.vmem [shape: bf16[32,250], index: 2, kind: input, shape index: {}]
  %s3 = inlined_call_operand.vmem [shape: bf16[32,250], index: 3, kind: input, shape index: {}]
  %s4 = inlined_call_operand.vmem [shape: bf16[250,20], index: 4, kind: input, shape index: {}]
  %s5 = inlined_call_operand.vmem [shape: f32[1,20], index: 5, kind: input, shape index: {}]
  %s6 = inlined_call_operand.vmem [shape: bf16[32,20], index: 6, kind: output, shape index: {}]
  %s7 = sld [smem:[#allocation0]]
  $region34: #{cnn_forward.4} parent=0
    _
  %s9 = ssub.s32 1, %s7
  %s10 = scalar_select 0, %s9, %s7
  // Predicated region
  $region2: #{cnn_forward.4} parent=0 // pred_check
    _
  $region3: #{cnn_forward.4} parent=0 // pred_check_branch
    %12 = sbr.rel (0) target = $region5
  $region4: #{cnn_forward.4} parent=0 // pred_region
    _
  $region5: #{cnn_forward.4} parent=0 // pred_fallthru
    _
  // Predicated region
  $region6: #{cnn_forward.4} parent=0 // pred_check
    _
  $region7: #{cnn_forward.4} parent=0 // pred_check_branch
    %14 = sbr.rel (0) target = $region9
  $region8: #{cnn_forward.4} parent=0 // pred_region
    _
  $region9: #{cnn_forward.4} parent=0 // pred_fallthru
    _
  // Predicated region
  $region10: #{cnn_forward.4} parent=0 // pred_check
    _
  $region11: #{cnn_forward.4} parent=0 // pred_check_branch
    %16 = sbr.rel (0) target = $region13
  $region12: #{cnn_forward.4} parent=0 // pred_region
    _
  $region13: #{cnn_forward.4} parent=0 // pred_fallthru
    _
  // Predicated region
  $region14: #{cnn_forward.4} parent=0 // pred_check
    _
  $region15: #{cnn_forward.4} parent=0 // pred_check_branch
    %18 = sbr.rel (0) target = $region17
  $region16: #{cnn_forward.4} parent=0 // pred_region
    _
  $region17: #{cnn_forward.4} parent=0 // pred_fallthru
    _
  // Predicated region
  $region18: #{cnn_forward.4} parent=0 // pred_check
    _
  $region19: #{cnn_forward.4} parent=0 // pred_check_branch
    %20 = sbr.rel (0) target = $region21
  $region20: #{cnn_forward.4} parent=0 // pred_region
    _
  $region21: #{cnn_forward.4} parent=0 // pred_fallthru
    _
  // Predicated region
  $region22: #{cnn_forward.4} parent=0 // pred_check
    _
  $region23: #{cnn_forward.4} parent=0 // pred_check_branch
    %22 = sbr.rel (0) target = $region25
  $region24: #{cnn_forward.4} parent=0 // pred_region
    _
  $region25: #{cnn_forward.4} parent=0 // pred_fallthru
    _
  %v24 = vld [vmem:[%s4] sm:$0xf]
  %v25 = vld [vmem:[%s4 + $0x4] sm:$0xf]
  %v26 = vld [vmem:[%s4 + $0x8] sm:$0xf]
  %v27 = vld [vmem:[%s4 + $0xc] sm:$0xf]
  %v28 = vld [vmem:[%s4 + $0x10] sm:$0xf]
  %v29 = vld [vmem:[%s4 + $0x14] sm:$0xf]
  %v30 = vld [vmem:[%s4 + $0x18] sm:$0xf]
  %v31 = vld [vmem:[%s4 + $0x1c] sm:$0xf]
  %v32 = vld [vmem:[%s4 + $0x20] sm:$0xf]
  %v33 = vld [vmem:[%s4 + $0x24] sm:$0xf]
  %v34 = vld [vmem:[%s4 + $0x28] sm:$0xf]
  %v35 = vld [vmem:[%s4 + $0x2c] sm:$0xf]
  %v36 = vld [vmem:[%s4 + $0x30] sm:$0xf]
  %v37 = vld [vmem:[%s4 + $0x34] sm:$0xf]
  %v38 = vld [vmem:[%s4 + $0x38] sm:$0xf]
  %v39 = vld [vmem:[%s4 + $0x3c] sm:$0xf]
  %v40 = vld [vmem:[%s4 + $0x40] sm:$0xf]
  %v41 = vld [vmem:[%s4 + $0x44] sm:$0xf]
  %v42 = vld [vmem:[%s4 + $0x48] sm:$0xf]
  %v43 = vld [vmem:[%s4 + $0x4c] sm:$0xf]
  %v44 = vld [vmem:[%s4 + $0x50] sm:$0xf]
  %v45 = vld [vmem:[%s4 + $0x54] sm:$0xf]
  %v46 = vld [vmem:[%s4 + $0x58] sm:$0xf]
  %v47 = vld [vmem:[%s4 + $0x5c] sm:$0xf]
  %v48 = vld [vmem:[%s4 + $0x60] sm:$0xf]
  %v49 = vld [vmem:[%s4 + $0x64] sm:$0xf]
  %v50 = vld [vmem:[%s4 + $0x68] sm:$0xf]
  %v51 = vld [vmem:[%s4 + $0x6c] sm:$0xf]
  %v52 = vld [vmem:[%s4 + $0x70] sm:$0xf]
  %v53 = vld [vmem:[%s4 + $0x74] sm:$0xf]
  %v54 = vld [vmem:[%s4 + $0x78] sm:$0xf]
  %v55 = vld [vmem:[%s4 + $0x7c] sm:$0x1]
  %v56 = vld [vmem:[%s0] sm:$0xff]
  %v57 = vld [vmem:[%s0 + $0x8] sm:$0xff]
  %v58 = vld [vmem:[%s0 + $0x10] sm:$0xff]
  %v59 = vld [vmem:[%s0 + $0x18] sm:$0xff]
  %v64 = vunpack.c.l.b16 %v56
  %v65 = vunpack.c.h.b16 %v56
  %v66 = vunpack.c.l.b16 %v57
  %v67 = vunpack.c.h.b16 %v57
  %v68 = vunpack.c.l.b16 %v58
  %v69 = vunpack.c.h.b16 %v58
  %v70 = vunpack.c.l.b16 %v59
  %v71 = vunpack.c.h.b16 %v59
  %v72 = vpack.c.b16 %v66, %v64
  %v73 = vpack.c.b16 %v67, %v65
  %v74 = vpack.c.b16 %v70, %v68
  %v75 = vpack.c.b16 %v71, %v69
  %v110 = vunpack.c.l.b16 %v24
  %v111 = vunpack.c.l.b16 %v25
  %v112 = vunpack.c.l.b16 %v26
  %v113 = vunpack.c.l.b16 %v27
  %v114 = vunpack.c.l.b16 %v28
  %v115 = vunpack.c.l.b16 %v29
  %v116 = vunpack.c.l.b16 %v30
  %v117 = vunpack.c.l.b16 %v31
  %v118 = vunpack.c.l.b16 %v32
  %v119 = vunpack.c.l.b16 %v33
  %v120 = vunpack.c.l.b16 %v34
  %v121 = vunpack.c.l.b16 %v35
  %v122 = vunpack.c.l.b16 %v36
  %v123 = vunpack.c.l.b16 %v37
  %v124 = vunpack.c.l.b16 %v38
  %v125 = vunpack.c.l.b16 %v39
  %v126 = vunpack.c.l.b16 %v40
  %v127 = vunpack.c.l.b16 %v41
  %v128 = vunpack.c.l.b16 %v42
  %v129 = vunpack.c.l.b16 %v43
  %v130 = vunpack.c.l.b16 %v44
  %v131 = vunpack.c.l.b16 %v45
  %v132 = vunpack.c.l.b16 %v46
  %v133 = vunpack.c.l.b16 %v47
  %v134 = vunpack.c.l.b16 %v48
  %v135 = vunpack.c.l.b16 %v49
  %v136 = vunpack.c.l.b16 %v50
  %v137 = vunpack.c.l.b16 %v51
  %v138 = vunpack.c.l.b16 %v52
  %v139 = vunpack.c.l.b16 %v53
  %v140 = vunpack.c.l.b16 %v54
  %v141 = vunpack.c.l.b16 %v55
  %v142 = vpack.c.b16 %v111, %v110
  %v143 = vpack.c.b16 %v113, %v112
  %v144 = vpack.c.b16 %v115, %v114
  %v145 = vpack.c.b16 %v117, %v116
  %v146 = vpack.c.b16 %v119, %v118
  %v147 = vpack.c.b16 %v121, %v120
  %v148 = vpack.c.b16 %v123, %v122
  %v149 = vpack.c.b16 %v125, %v124
  %v150 = vpack.c.b16 %v127, %v126
  %v151 = vpack.c.b16 %v129, %v128
  %v152 = vpack.c.b16 %v131, %v130
  %v153 = vpack.c.b16 %v133, %v132
  %v154 = vpack.c.b16 %v135, %v134
  %v155 = vpack.c.b16 %v137, %v136
  %v156 = vpack.c.b16 %v139, %v138
  %v157 = vpack.c.b16 %v141, %v140
  %vm173 = vcmask 998400
  %v175 = vsel %vm173, %v73, 0
  %v178 = vsel %vm173, %v75, 0
  %vm180 = vcmask 1044480
  %v182 = vsel %vm180, %v157, 0
  %184 = vmatprep.subr.bf16.mxu0 0
  %185 = vmatpush1.bf16.msra.mxu0 %v142
  %186 = vmatprep.subr.bf16.mxu0 0
  %187 = vmatpush1.bf16.msra.mxu0 %v143
  %188 = vmatprep.subr.bf16.mxu0 0
  %189 = vmatpush1.bf16.msra.mxu0 %v144
  %190 = vmatprep.subr.bf16.mxu0 0
  %191 = vmatpush1.bf16.msra.mxu0 %v145
  %192 = vmatprep.subr.bf16.mxu0 0
  %193 = vmatpush1.bf16.msra.mxu0 %v146
  %194 = vmatprep.subr.bf16.mxu0 0
  %195 = vmatpush1.bf16.msra.mxu0 %v147
  %196 = vmatprep.subr.bf16.mxu0 0
  %197 = vmatpush1.bf16.msra.mxu0 %v148
  %198 = vmatprep.subr.bf16.mxu0 0
  %199 = vmatpush1.bf16.msra.mxu0 %v149
  %200 = vmatprep.subr.bf16.mxu0 0
  %201 = vmatpush1.bf16.msra.mxu0 %v150
  %202 = vmatprep.subr.bf16.mxu0 0
  %203 = vmatpush1.bf16.msra.mxu0 %v151
  %204 = vmatprep.subr.bf16.mxu0 0
  %205 = vmatpush1.bf16.msra.mxu0 %v152
  %206 = vmatprep.subr.bf16.mxu0 0
  %207 = vmatpush1.bf16.msra.mxu0 %v153
  %208 = vmatprep.subr.bf16.mxu0 0
  %209 = vmatpush1.bf16.msra.mxu0 %v154
  %210 = vmatprep.subr.bf16.mxu0 0
  %211 = vmatpush1.bf16.msra.mxu0 %v155
  %212 = vmatprep.subr.bf16.mxu0 0
  %213 = vmatpush1.bf16.msra.mxu0 %v156
  %214 = vmatprep.subr.bf16.mxu0 0
  %215 = vmatpush1.bf16.msra.mxu0 %v182
  %216 = vmatprep.mubr.bf16.mxu0 %v175
  %217 = vmatmul.mubr.bf16.gmra.mrb[0].mxu0 %v72
  %v218 = vpop.f32.mrb[0].mxu0
  %v219 = vadd.f32 0.0, %v218
  %v220 = vpop.f32.mrb[0].mxu0
  %v221 = vpop.f32.mrb[0].mxu0
  %v222 = vadd.f32 0.0, %v221
  %v223 = vpop.f32.mrb[0].mxu0
  %224 = vmatprep.mubr.bf16.mxu0 %v178
  %225 = vmatmul.mubr.bf16.gmra.mrb[0].mxu0 %v74
  %v226 = vpop.f32.mrb[0].mxu0
  %v227 = vadd.f32 0.0, %v226
  %v228 = vpop.f32.mrb[0].mxu0
  %v229 = vpop.f32.mrb[0].mxu0
  %v230 = vadd.f32 0.0, %v229
  %v231 = vpop.f32.mrb[0].mxu0
  %232 = vdwg.mxu0
  %v233 = vld [vmem:[%s1] sm:$0xff]
  %v234 = vld [vmem:[%s1 + $0x8] sm:$0xff]
  %v235 = vld [vmem:[%s1 + $0x10] sm:$0xff]
  %v236 = vld [vmem:[%s1 + $0x18] sm:$0xff]
  %v241 = vunpack.c.l.b16 %v233
  %v242 = vunpack.c.h.b16 %v233
  %v243 = vunpack.c.l.b16 %v234
  %v244 = vunpack.c.h.b16 %v234
  %v245 = vunpack.c.l.b16 %v235
  %v246 = vunpack.c.h.b16 %v235
  %v247 = vunpack.c.l.b16 %v236
  %v248 = vunpack.c.h.b16 %v236
  %v249 = vpack.c.b16 %v243, %v241
  %v250 = vpack.c.b16 %v244, %v242
  %v251 = vpack.c.b16 %v247, %v245
  %v252 = vpack.c.b16 %v248, %v246
  %v256 = vsel %vm173, %v250, 0
  %v259 = vsel %vm173, %v252, 0
  %261 = vmatprep.subr.bf16.mxu0 0
  %262 = vmatpush1.bf16.msra.mxu0 %v142
  %263 = vmatprep.subr.bf16.mxu0 0
  %264 = vmatpush1.bf16.msra.mxu0 %v143
  %265 = vmatprep.subr.bf16.mxu0 0
  %266 = vmatpush1.bf16.msra.mxu0 %v144
  %267 = vmatprep.subr.bf16.mxu0 0
  %268 = vmatpush1.bf16.msra.mxu0 %v145
  %269 = vmatprep.subr.bf16.mxu0 0
  %270 = vmatpush1.bf16.msra.mxu0 %v146
  %271 = vmatprep.subr.bf16.mxu0 0
  %272 = vmatpush1.bf16.msra.mxu0 %v147
  %273 = vmatprep.subr.bf16.mxu0 0
  %274 = vmatpush1.bf16.msra.mxu0 %v148
  %275 = vmatprep.subr.bf16.mxu0 0
  %276 = vmatpush1.bf16.msra.mxu0 %v149
  %277 = vmatprep.subr.bf16.mxu0 0
  %278 = vmatpush1.bf16.msra.mxu0 %v150
  %279 = vmatprep.subr.bf16.mxu0 0
  %280 = vmatpush1.bf16.msra.mxu0 %v151
  %281 = vmatprep.subr.bf16.mxu0 0
  %282 = vmatpush1.bf16.msra.mxu0 %v152
  %283 = vmatprep.subr.bf16.mxu0 0
  %284 = vmatpush1.bf16.msra.mxu0 %v153
  %285 = vmatprep.subr.bf16.mxu0 0
  %286 = vmatpush1.bf16.msra.mxu0 %v154
  %287 = vmatprep.subr.bf16.mxu0 0
  %288 = vmatpush1.bf16.msra.mxu0 %v155
  %289 = vmatprep.subr.bf16.mxu0 0
  %290 = vmatpush1.bf16.msra.mxu0 %v156
  %291 = vmatprep.subr.bf16.mxu0 0
  %292 = vmatpush1.bf16.msra.mxu0 %v182
  %293 = vmatprep.mubr.bf16.mxu0 %v256
  %294 = vmatmul.mubr.bf16.gmra.mrb[0].mxu0 %v249
  %v295 = vpop.f32.mrb[0].mxu0
  %v296 = vadd.f32 0.0, %v295
  %v297 = vpop.f32.mrb[0].mxu0
  %v298 = vpop.f32.mrb[0].mxu0
  %v299 = vadd.f32 0.0, %v298
  %v300 = vpop.f32.mrb[0].mxu0
  %301 = vmatprep.mubr.bf16.mxu0 %v259
  %302 = vmatmul.mubr.bf16.gmra.mrb[0].mxu0 %v251
  %v303 = vpop.f32.mrb[0].mxu0
  %v304 = vadd.f32 0.0, %v303
  %v305 = vpop.f32.mrb[0].mxu0
  %v306 = vpop.f32.mrb[0].mxu0
  %v307 = vadd.f32 0.0, %v306
  %v308 = vpop.f32.mrb[0].mxu0
  %309 = vdwg.mxu0
  %v310 = vld [vmem:[%s2] sm:$0xff]
  %v311 = vld [vmem:[%s2 + $0x8] sm:$0xff]
  %v312 = vld [vmem:[%s2 + $0x10] sm:$0xff]
  %v313 = vld [vmem:[%s2 + $0x18] sm:$0xff]
  %v318 = vunpack.c.l.b16 %v310
  %v319 = vunpack.c.h.b16 %v310
  %v320 = vunpack.c.l.b16 %v311
  %v321 = vunpack.c.h.b16 %v311
  %v322 = vunpack.c.l.b16 %v312
  %v323 = vunpack.c.h.b16 %v312
  %v324 = vunpack.c.l.b16 %v313
  %v325 = vunpack.c.h.b16 %v313
  %v326 = vpack.c.b16 %v320, %v318
  %v327 = vpack.c.b16 %v321, %v319
  %v328 = vpack.c.b16 %v324, %v322
  %v329 = vpack.c.b16 %v325, %v323
  %v333 = vsel %vm173, %v327, 0
  %v336 = vsel %vm173, %v329, 0
  %338 = vmatprep.subr.bf16.mxu0 0
  %339 = vmatpush1.bf16.msra.mxu0 %v142
  %340 = vmatprep.subr.bf16.mxu0 0
  %341 = vmatpush1.bf16.msra.mxu0 %v143
  %342 = vmatprep.subr.bf16.mxu0 0
  %343 = vmatpush1.bf16.msra.mxu0 %v144
  %344 = vmatprep.subr.bf16.mxu0 0
  %345 = vmatpush1.bf16.msra.mxu0 %v145
  %346 = vmatprep.subr.bf16.mxu0 0
  %347 = vmatpush1.bf16.msra.mxu0 %v146
  %348 = vmatprep.subr.bf16.mxu0 0
  %349 = vmatpush1.bf16.msra.mxu0 %v147
  %350 = vmatprep.subr.bf16.mxu0 0
  %351 = vmatpush1.bf16.msra.mxu0 %v148
  %352 = vmatprep.subr.bf16.mxu0 0
  %353 = vmatpush1.bf16.msra.mxu0 %v149
  %354 = vmatprep.subr.bf16.mxu0 0
  %355 = vmatpush1.bf16.msra.mxu0 %v150
  %356 = vmatprep.subr.bf16.mxu0 0
  %357 = vmatpush1.bf16.msra.mxu0 %v151
  %358 = vmatprep.subr.bf16.mxu0 0
  %359 = vmatpush1.bf16.msra.mxu0 %v152
  %360 = vmatprep.subr.bf16.mxu0 0
  %361 = vmatpush1.bf16.msra.mxu0 %v153
  %362 = vmatprep.subr.bf16.mxu0 0
  %363 = vmatpush1.bf16.msra.mxu0 %v154
  %364 = vmatprep.subr.bf16.mxu0 0
  %365 = vmatpush1.bf16.msra.mxu0 %v155
  %366 = vmatprep.subr.bf16.mxu0 0
  %367 = vmatpush1.bf16.msra.mxu0 %v156
  %368 = vmatprep.subr.bf16.mxu0 0
  %369 = vmatpush1.bf16.msra.mxu0 %v182
  %370 = vmatprep.mubr.bf16.mxu0 %v333
  %371 = vmatmul.mubr.bf16.gmra.mrb[0].mxu0 %v326
  %v372 = vpop.f32.mrb[0].mxu0
  %v373 = vadd.f32 0.0, %v372
  %v374 = vpop.f32.mrb[0].mxu0
  %v375 = vpop.f32.mrb[0].mxu0
  %v376 = vadd.f32 0.0, %v375
  %v377 = vpop.f32.mrb[0].mxu0
  %378 = vmatprep.mubr.bf16.mxu0 %v336
  %379 = vmatmul.mubr.bf16.gmra.mrb[0].mxu0 %v328
  %v380 = vpop.f32.mrb[0].mxu0
  %v381 = vadd.f32 0.0, %v380
  %v382 = vpop.f32.mrb[0].mxu0
  %v383 = vpop.f32.mrb[0].mxu0
  %v384 = vadd.f32 0.0, %v383
  %v385 = vpop.f32.mrb[0].mxu0
  %386 = vdwg.mxu0
  %v387 = vld [vmem:[%s3] sm:$0xff]
  %v388 = vld [vmem:[%s3 + $0x8] sm:$0xff]
  %v389 = vld [vmem:[%s3 + $0x10] sm:$0xff]
  %v390 = vld [vmem:[%s3 + $0x18] sm:$0xff]
  %v395 = vunpack.c.l.b16 %v387
  %v396 = vunpack.c.h.b16 %v387
  %v397 = vunpack.c.l.b16 %v388
  %v398 = vunpack.c.h.b16 %v388
  %v399 = vunpack.c.l.b16 %v389
  %v400 = vunpack.c.h.b16 %v389
  %v401 = vunpack.c.l.b16 %v390
  %v402 = vunpack.c.h.b16 %v390
  %v403 = vpack.c.b16 %v397, %v395
  %v404 = vpack.c.b16 %v398, %v396
  %v405 = vpack.c.b16 %v401, %v399
  %v406 = vpack.c.b16 %v402, %v400
  %v410 = vsel %vm173, %v404, 0
  %v413 = vsel %vm173, %v406, 0
  %415 = vmatprep.subr.bf16.mxu0 0
  %416 = vmatpush1.bf16.msra.mxu0 %v142
  %417 = vmatprep.subr.bf16.mxu0 0
  %418 = vmatpush1.bf16.msra.mxu0 %v143
  %419 = vmatprep.subr.bf16.mxu0 0
  %420 = vmatpush1.bf16.msra.mxu0 %v144
  %421 = vmatprep.subr.bf16.mxu0 0
  %422 = vmatpush1.bf16.msra.mxu0 %v145
  %423 = vmatprep.subr.bf16.mxu0 0
  %424 = vmatpush1.bf16.msra.mxu0 %v146
  %425 = vmatprep.subr.bf16.mxu0 0
  %426 = vmatpush1.bf16.msra.mxu0 %v147
  %427 = vmatprep.subr.bf16.mxu0 0
  %428 = vmatpush1.bf16.msra.mxu0 %v148
  %429 = vmatprep.subr.bf16.mxu0 0
  %430 = vmatpush1.bf16.msra.mxu0 %v149
  %431 = vmatprep.subr.bf16.mxu0 0
  %432 = vmatpush1.bf16.msra.mxu0 %v150
  %433 = vmatprep.subr.bf16.mxu0 0
  %434 = vmatpush1.bf16.msra.mxu0 %v151
  %435 = vmatprep.subr.bf16.mxu0 0
  %436 = vmatpush1.bf16.msra.mxu0 %v152
  %437 = vmatprep.subr.bf16.mxu0 0
  %438 = vmatpush1.bf16.msra.mxu0 %v153
  %439 = vmatprep.subr.bf16.mxu0 0
  %440 = vmatpush1.bf16.msra.mxu0 %v154
  %441 = vmatprep.subr.bf16.mxu0 0
  %442 = vmatpush1.bf16.msra.mxu0 %v155
  %443 = vmatprep.subr.bf16.mxu0 0
  %444 = vmatpush1.bf16.msra.mxu0 %v156
  %445 = vmatprep.subr.bf16.mxu0 0
  %446 = vmatpush1.bf16.msra.mxu0 %v182
  %447 = vmatprep.mubr.bf16.mxu0 %v410
  %448 = vmatmul.mubr.bf16.gmra.mrb[0].mxu0 %v403
  %v449 = vpop.f32.mrb[0].mxu0
  %v450 = vadd.f32 0.0, %v449
  %v451 = vpop.f32.mrb[0].mxu0
  %v452 = vpop.f32.mrb[0].mxu0
  %v453 = vadd.f32 0.0, %v452
  %v454 = vpop.f32.mrb[0].mxu0
  %455 = vmatprep.mubr.bf16.mxu0 %v413
  %456 = vmatmul.mubr.bf16.gmra.mrb[0].mxu0 %v405
  %v457 = vpop.f32.mrb[0].mxu0
  %v458 = vadd.f32 0.0, %v457
  %v459 = vpop.f32.mrb[0].mxu0
  %v460 = vpop.f32.mrb[0].mxu0
  %v461 = vadd.f32 0.0, %v460
  %v462 = vpop.f32.mrb[0].mxu0
  %463 = vdwg.mxu0
  %v464 = vmax.f32 %v219, %v296
  %v465 = vmax.f32 %v222, %v299
  %v466 = vmax.f32 %v227, %v304
  %v467 = vmax.f32 %v230, %v307
  %v468 = vmax.f32 %v373, %v450
  %v469 = vmax.f32 %v376, %v453
  %v470 = vmax.f32 %v381, %v458
  %v471 = vmax.f32 %v384, %v461
  %v472 = vmax.f32 %v464, %v468
  %v473 = vmax.f32 %v465, %v469
  %v474 = vmax.f32 %v466, %v470
  %v475 = vmax.f32 %v467, %v471
  %v476 = vld [vmem:[%s5] sm:$0x1]
  %v478 = vlaneseq
  %v479 = vshrl.u32 %v478, 7
  %v480 = vsub.s32 0, %v479
  %v481 = vrot.slane %v476, %v480
  %v483 = vadd.f32 %v472, %v481
  %v484 = vadd.f32 %v473, %v481
  %v485 = vadd.f32 %v474, %v481
  %v486 = vadd.f32 %v475, %v481
  %v487 = vmax.f32 %v483, 0.0
  %v488 = vmax.f32 %v484, 0.0
  %v489 = vmax.f32 %v485, 0.0
  %v490 = vmax.f32 %v486, 0.0
  %v491 = vpack.c.bf16 %v488, %v487
  %v492 = vpack.c.bf16 %v490, %v489
  %v495 = vunpack.c.l.b16 %v491
  %v496 = vunpack.c.h.b16 %v491
  %v497 = vunpack.c.l.b16 %v492
  %v498 = vunpack.c.h.b16 %v492
  %v499 = vpack.c.b16 %v495, %v495
  %v500 = vpack.c.b16 %v496, %v496
  %v501 = vpack.c.b16 %v497, %v497
  %v502 = vpack.c.b16 %v498, %v498
  %vm507 = vcmask 158720
  %508 = vst.msk [vmem:[%s6] sm:$0xf] %vm507, %v499
  %509 = vst.msk [vmem:[%s6 + $0x4] sm:$0xf] %vm507, %v500
  %510 = vst.msk [vmem:[%s6 + $0x8] sm:$0xf] %vm507, %v501
  %511 = vst.msk [vmem:[%s6 + $0xc] sm:$0xf] %vm507, %v502
  // Predicated region
  $region26: #{cnn_forward.4} parent=0 // pred_check
    _
  $region27: #{cnn_forward.4} parent=0 // pred_check_branch
    %513 = sbr.rel (0) target = $region29
  $region28: #{cnn_forward.4} parent=0 // pred_region
    _
  $region29: #{cnn_forward.4} parent=0 // pred_fallthru
    _
  // Predicated region
  $region30: #{cnn_forward.4} parent=0 // pred_check
    _
  $region31: #{cnn_forward.4} parent=0 // pred_check_branch
    %515 = sbr.rel (0) target = $region33
  $region32: #{cnn_forward.4} parent=0 // pred_region
    _
  $region33: #{cnn_forward.4} parent=0 // pred_fallthru
    _

// kernel: cnn_forward.5
$region0: #{cnn_forward.5}
  #allocation0 [shape = 'u32[]', space=smem, size = 0x4, offset = 0x4, fixed_abs, tag = 'smem constant byte address 0x4 - core index']
  #allocation1 [shape = 'u32[144,128]{1,0:T(1,128)}', space=vmem, size = 0x12000, scoped, tag = 'internal scratch']
  %s0 = inlined_call_operand.vmem [shape: bf16[2,320], index: 0, kind: input, shape index: {}]
  %s1 = inlined_call_operand.vmem [shape: bf16[320,50], index: 1, kind: input, shape index: {}]
  %s2 = inlined_call_operand.vmem [shape: f32[1,50], index: 2, kind: input, shape index: {}]
  %s3 = inlined_call_operand.vmem [shape: bf16[50,10], index: 3, kind: input, shape index: {}]
  %s4 = inlined_call_operand.vmem [shape: f32[1,10], index: 4, kind: input, shape index: {}]
  %s5 = inlined_call_operand.hbm [shape: f32[2,10], index: 5, kind: output, shape index: {}]
  %s6 = sld [smem:[#allocation0]]
  $region30: #{cnn_forward.5} parent=0
    _
  %s8 = ssub.s32 1, %s6
  %s9 = scalar_select 0, %s8, %s6
  $region1: #{cnn_forward.5} parent=0
    #allocation2 [shape = 'u8[1024]{0}', space=vmem, size = 0x400, scoped, tag = 'output window, operand 0, single buffered']
    #allocation3 [shape = 's32[1]{0}', space=sflag, size = 0x4, scoped, tag = 'scoped memory for cnn_forward.5']
    %10 = vsyncpa [#allocation3], 0
    // Predicated region
    $region2: #{cnn_forward.5} parent=1 // pred_check
      _
    $region3: #{cnn_forward.5} parent=1 // pred_check_branch
      %12 = sbr.rel (0) target = $region5
    $region4: #{cnn_forward.5} parent=1 // pred_region
      _
    $region5: #{cnn_forward.5} parent=1 // pred_fallthru
      _
    // Predicated region
    $region6: #{cnn_forward.5} parent=1 // pred_check
      _
    $region7: #{cnn_forward.5} parent=1 // pred_check_branch
      %14 = sbr.rel (0) target = $region9
    $region8: #{cnn_forward.5} parent=1 // pred_region
      _
    $region9: #{cnn_forward.5} parent=1 // pred_fallthru
      _
    // Predicated region
    $region10: #{cnn_forward.5} parent=1 // pred_check
      _
    $region11: #{cnn_forward.5} parent=1 // pred_check_branch
      %16 = sbr.rel (0) target = $region13
    $region12: #{cnn_forward.5} parent=1 // pred_region
      _
    $region13: #{cnn_forward.5} parent=1 // pred_fallthru
      _
    // Predicated region
    $region14: #{cnn_forward.5} parent=1 // pred_check
      _
    $region15: #{cnn_forward.5} parent=1 // pred_check_branch
      %18 = sbr.rel (0) target = $region17
    $region16: #{cnn_forward.5} parent=1 // pred_region
      _
    $region17: #{cnn_forward.5} parent=1 // pred_fallthru
      _
    // Predicated region
    $region18: #{cnn_forward.5} parent=1 // pred_check
      _
    $region19: #{cnn_forward.5} parent=1 // pred_check_branch
      %20 = sbr.rel (0) target = $region21
    $region20: #{cnn_forward.5} parent=1 // pred_region
      _
    $region21: #{cnn_forward.5} parent=1 // pred_fallthru
      _
    %v22 = vld [vmem:[%s0] sm:$0x7]
    %v23 = vld [vmem:[%s1] sm:$0xf]
    %v24 = vld [vmem:[%s1 + $0x4] sm:$0xf]
    %v25 = vld [vmem:[%s1 + $0x8] sm:$0xf]
    %v26 = vld [vmem:[%s1 + $0xc] sm:$0xf]
    %v27 = vld [vmem:[%s1 + $0x10] sm:$0xf]
    %v28 = vld [vmem:[%s1 + $0x14] sm:$0xf]
    %v29 = vld [vmem:[%s1 + $0x18] sm:$0xf]
    %v30 = vld [vmem:[%s1 + $0x1c] sm:$0xf]
    %v31 = vld [vmem:[%s1 + $0x20] sm:$0xf]
    %v32 = vld [vmem:[%s1 + $0x24] sm:$0xf]
    %v33 = vld [vmem:[%s1 + $0x28] sm:$0xf]
    %v34 = vld [vmem:[%s1 + $0x2c] sm:$0xf]
    %v35 = vld [vmem:[%s1 + $0x30] sm:$0xf]
    %v36 = vld [vmem:[%s1 + $0x34] sm:$0xf]
    %v37 = vld [vmem:[%s1 + $0x38] sm:$0xf]
    %v38 = vld [vmem:[%s1 + $0x3c] sm:$0xf]
    %v39 = vld [vmem:[%s1 + $0x40] sm:$0xf]
    %v40 = vld [vmem:[%s1 + $0x44] sm:$0xf]
    %v41 = vld [vmem:[%s1 + $0x48] sm:$0xf]
    %v42 = vld [vmem:[%s1 + $0x4c] sm:$0xf]
    %v43 = vld [vmem:[%s1 + $0x50] sm:$0xf]
    %v44 = vld [vmem:[%s1 + $0x54] sm:$0xf]
    %v45 = vld [vmem:[%s1 + $0x58] sm:$0xf]
    %v46 = vld [vmem:[%s1 + $0x5c] sm:$0xf]
    %v47 = vld [vmem:[%s1 + $0x60] sm:$0xf]
    %v48 = vld [vmem:[%s1 + $0x64] sm:$0xf]
    %v49 = vld [vmem:[%s1 + $0x68] sm:$0xf]
    %v50 = vld [vmem:[%s1 + $0x6c] sm:$0xf]
    %v51 = vld [vmem:[%s1 + $0x70] sm:$0xf]
    %v52 = vld [vmem:[%s1 + $0x74] sm:$0xf]
    %v53 = vld [vmem:[%s1 + $0x78] sm:$0xf]
    %v54 = vld [vmem:[%s1 + $0x7c] sm:$0xf]
    %v55 = vld [vmem:[%s1 + $0x80] sm:$0xf]
    %v56 = vld [vmem:[%s1 + $0x84] sm:$0xf]
    %v57 = vld [vmem:[%s1 + $0x88] sm:$0xf]
    %v58 = vld [vmem:[%s1 + $0x8c] sm:$0xf]
    %v59 = vld [vmem:[%s1 + $0x90] sm:$0xf]
    %v60 = vld [vmem:[%s1 + $0x94] sm:$0xf]
    %v61 = vld [vmem:[%s1 + $0x98] sm:$0xf]
    %v62 = vld [vmem:[%s1 + $0x9c] sm:$0xf]
    %v63 = vld [vmem:[%s2] sm:$0x1]
    %v65 = vlaneseq
    %v66 = vshrl.u32 %v65, 7
    %v67 = vsub.s32 0, %v66
    %v68 = vrot.slane %v63, %v67
    %v72 = vunpack.c.l.s4 1966171168
    %v73 = vunpack.c.0.s8 %v72
    %v74 = vlaneseq
    %v75 = vshrl.u32 %v74, 7
    %v76 = vsub.s32 %v73, %v75
    %v77 = vrot.slane %v22, %v76
    %v78 = vcombine.high %v77, %v77
    %v80 = vunpack.c.l.s4 1966171168
    %v81 = vunpack.c.0.s8 %v80
    %v82 = vlaneseq
    %v83 = vshrl.u32 %v82, 7
    %v84 = vsub.s32 %v81, %v83
    %v85 = vrot.slane %v77, %v84
    %v87 = vunpack.c.l.s4 1966171168
    %v88 = vunpack.c.0.s8 %v87
    %v89 = vlaneseq
    %v90 = vshrl.u32 %v89, 7
    %v91 = vsub.s32 %v88, %v90
    %v92 = vrot.slane %v78, %v91
    %v93 = vcombine.high %v85, %v85
    %v136 = vunpack.c.l.b16 %v23
    %v137 = vunpack.c.l.b16 %v24
    %v138 = vunpack.c.l.b16 %v25
    %v139 = vunpack.c.l.b16 %v26
    %v140 = vunpack.c.l.b16 %v27
    %v141 = vunpack.c.l.b16 %v28
    %v142 = vunpack.c.l.b16 %v29
    %v143 = vunpack.c.l.b16 %v30
    %v144 = vunpack.c.l.b16 %v31
    %v145 = vunpack.c.l.b16 %v32
    %v146 = vunpack.c.l.b16 %v33
    %v147 = vunpack.c.l.b16 %v34
    %v148 = vunpack.c.l.b16 %v35
    %v149 = vunpack.c.l.b16 %v36
    %v150 = vunpack.c.l.b16 %v37
    %v151 = vunpack.c.l.b16 %v38
    %v152 = vunpack.c.l.b16 %v39
    %v153 = vunpack.c.l.b16 %v40
    %v154 = vunpack.c.l.b16 %v41
    %v155 = vunpack.c.l.b16 %v42
    %v156 = vunpack.c.l.b16 %v43
    %v157 = vunpack.c.l.b16 %v44
    %v158 = vunpack.c.l.b16 %v45
    %v159 = vunpack.c.l.b16 %v46
    %v160 = vunpack.c.l.b16 %v47
    %v161 = vunpack.c.l.b16 %v48
    %v162 = vunpack.c.l.b16 %v49
    %v163 = vunpack.c.l.b16 %v50
    %v164 = vunpack.c.l.b16 %v51
    %v165 = vunpack.c.l.b16 %v52
    %v166 = vunpack.c.l.b16 %v53
    %v167 = vunpack.c.l.b16 %v54
    %v168 = vunpack.c.l.b16 %v55
    %v169 = vunpack.c.l.b16 %v56
    %v170 = vunpack.c.l.b16 %v57
    %v171 = vunpack.c.l.b16 %v58
    %v172 = vunpack.c.l.b16 %v59
    %v173 = vunpack.c.l.b16 %v60
    %v174 = vunpack.c.l.b16 %v61
    %v175 = vunpack.c.l.b16 %v62
    %v176 = vpack.c.b16 %v137, %v136
    %v177 = vpack.c.b16 %v139, %v138
    %v178 = vpack.c.b16 %v141, %v140
    %v179 = vpack.c.b16 %v143, %v142
    %v180 = vpack.c.b16 %v145, %v144
    %v181 = vpack.c.b16 %v147, %v146
    %v182 = vpack.c.b16 %v149, %v148
    %v183 = vpack.c.b16 %v151, %v150
    %v184 = vpack.c.b16 %v153, %v152
    %v185 = vpack.c.b16 %v155, %v154
    %v186 = vpack.c.b16 %v157, %v156
    %v187 = vpack.c.b16 %v159, %v158
    %v188 = vpack.c.b16 %v161, %v160
    %v189 = vpack.c.b16 %v163, %v162
    %v190 = vpack.c.b16 %v165, %v164
    %v191 = vpack.c.b16 %v167, %v166
    %v192 = vpack.c.b16 %v169, %v168
    %v193 = vpack.c.b16 %v171, %v170
    %v194 = vpack.c.b16 %v173, %v172
    %v195 = vpack.c.b16 %v175, %v174
    %vm216 = vcmask 523264
    %v218 = vsel %vm216, %v93, 0
    %220 = vmatprep.subr.bf16.mxu0 0
    %221 = vmatpush1.bf16.msra.mxu0 %v176
    %222 = vmatprep.subr.bf16.mxu0 0
    %223 = vmatpush1.bf16.msra.mxu0 %v177
    %224 = vmatprep.subr.bf16.mxu0 0
    %225 = vmatpush1.bf16.msra.mxu0 %v178
    %226 = vmatprep.subr.bf16.mxu0 0
    %227 = vmatpush1.bf16.msra.mxu0 %v179
    %228 = vmatprep.subr.bf16.mxu0 0
    %229 = vmatpush1.bf16.msra.mxu0 %v180
    %230 = vmatprep.subr.bf16.mxu0 0
    %231 = vmatpush1.bf16.msra.mxu0 %v181
    %232 = vmatprep.subr.bf16.mxu0 0
    %233 = vmatpush1.bf16.msra.mxu0 %v182
    %234 = vmatprep.subr.bf16.mxu0 0
    %235 = vmatpush1.bf16.msra.mxu0 %v183
    %236 = vmatprep.subr.bf16.mxu0 0
    %237 = vmatpush1.bf16.msra.mxu0 %v184
    %238 = vmatprep.subr.bf16.mxu0 0
    %239 = vmatpush1.bf16.msra.mxu0 %v185
    %240 = vmatprep.subr.bf16.mxu0 0
    %241 = vmatpush1.bf16.msra.mxu0 %v186
    %242 = vmatprep.subr.bf16.mxu0 0
    %243 = vmatpush1.bf16.msra.mxu0 %v187
    %244 = vmatprep.subr.bf16.mxu0 0
    %245 = vmatpush1.bf16.msra.mxu0 %v188
    %246 = vmatprep.subr.bf16.mxu0 0
    %247 = vmatpush1.bf16.msra.mxu0 %v189
    %248 = vmatprep.subr.bf16.mxu0 0
    %249 = vmatpush1.bf16.msra.mxu0 %v190
    %250 = vmatprep.subr.bf16.mxu0 0
    %251 = vmatpush1.bf16.msra.mxu0 %v191
    %252 = vmatprep.mubr.bf16.mxu0 %v92
    %253 = vmatmul.mubr.bf16.gmra.mrb[0].mxu0 %v85
    %v254 = vpop.f32.mrb[0].mxu0
    %v255 = vadd.f32 %v68, %v254
    %v256 = vpop.f32.mrb[0].mxu0
    %v257 = vpop.f32.mrb[0].mxu0
    %v258 = vpop.f32.mrb[0].mxu0
    %259 = vdwg.mxu0
    %260 = vmatprep.subr.bf16.mxu0 0
    %261 = vmatpush1.bf16.msra.mxu0 %v192
    %262 = vmatprep.subr.bf16.mxu0 0
    %263 = vmatpush1.bf16.msra.mxu0 %v193
    %264 = vmatprep.subr.bf16.mxu0 0
    %265 = vmatpush1.bf16.msra.mxu0 %v194
    %266 = vmatprep.subr.bf16.mxu0 0
    %267 = vmatpush1.bf16.msra.mxu0 %v195
    %268 = vmatprep.subr.bf16.mxu0 0
    %269 = vmatpush1.bf16.msra.mxu0 0
    %270 = vmatprep.subr.bf16.mxu0 0
    %271 = vmatpush1.bf16.msra.mxu0 0
    %272 = vmatprep.subr.bf16.mxu0 0
    %273 = vmatpush1.bf16.msra.mxu0 0
    %274 = vmatprep.subr.bf16.mxu0 0
    %275 = vmatpush1.bf16.msra.mxu0 0
    %276 = vmatprep.subr.bf16.mxu0 0
    %277 = vmatpush1.bf16.msra.mxu0 0
    %278 = vmatprep.subr.bf16.mxu0 0
    %279 = vmatpush1.bf16.msra.mxu0 0
    %280 = vmatprep.subr.bf16.mxu0 0
    %281 = vmatpush1.bf16.msra.mxu0 0
    %282 = vmatprep.subr.bf16.mxu0 0
    %283 = vmatpush1.bf16.msra.mxu0 0
    %284 = vmatprep.subr.bf16.mxu0 0
    %285 = vmatpush1.bf16.msra.mxu0 0
    %286 = vmatprep.subr.bf16.mxu0 0
    %287 = vmatpush1.bf16.msra.mxu0 0
    %288 = vmatprep.subr.bf16.mxu0 0
    %289 = vmatpush1.bf16.msra.mxu0 0
    %290 = vmatprep.subr.bf16.mxu0 0
    %291 = vmatpush1.bf16.msra.mxu0 0
    %292 = vmatprep.mubr.bf16.mxu0 0
    %293 = vmatmul.mubr.bf16.gmra.mrb[0].mxu0 %v218
    %v294 = vpop.f32.mrb[0].mxu0
    %v295 = vadd.f32 %v255, %v294
    %v296 = vpop.f32.mrb[0].mxu0
    %v297 = vpop.f32.mrb[0].mxu0
    %v298 = vpop.f32.mrb[0].mxu0
    %299 = vdwg.mxu0
    %v300 = vmax.f32 %v295, 0.0
    %v301 = vpack.c.bf16 %v300, %v300
    %v302 = vld [vmem:[%s3] sm:$0xf]
    %v303 = vld [vmem:[%s3 + $0x4] sm:$0xf]
    %v304 = vld [vmem:[%s3 + $0x8] sm:$0xf]
    %v305 = vld [vmem:[%s3 + $0xc] sm:$0xf]
    %v306 = vld [vmem:[%s3 + $0x10] sm:$0xf]
    %v307 = vld [vmem:[%s3 + $0x14] sm:$0xf]
    %v308 = vld [vmem:[%s3 + $0x18] sm:$0x1]
    %v309 = vld [vmem:[%s4] sm:$0x1]
    %v311 = vlaneseq
    %v312 = vshrl.u32 %v311, 7
    %v313 = vsub.s32 0, %v312
    %v314 = vrot.slane %v309, %v313
    %v323 = vunpack.c.l.b16 %v302
    %v324 = vunpack.c.l.b16 %v303
    %v325 = vunpack.c.l.b16 %v304
    %v326 = vunpack.c.l.b16 %v305
    %v327 = vunpack.c.l.b16 %v306
    %v328 = vunpack.c.l.b16 %v307
    %v329 = vunpack.c.l.b16 %v308
    %v330 = vpack.c.b16 %v324, %v323
    %v331 = vpack.c.b16 %v326, %v325
    %v332 = vpack.c.b16 %v328, %v327
    %v333 = vpack.c.b16 %v329, %v329
    %vm337 = vcmask 408576
    %v339 = vsel %vm337, %v301, 0
    %vm341 = vcmask 1040384
    %v343 = vsel %vm341, %v333, 0
    %345 = vmatprep.subr.bf16.mxu0 0
    %346 = vmatpush1.bf16.msra.mxu0 %v330
    %347 = vmatprep.subr.bf16.mxu0 0
    %348 = vmatpush1.bf16.msra.mxu0 %v331
    %349 = vmatprep.subr.bf16.mxu0 0
    %350 = vmatpush1.bf16.msra.mxu0 %v332
    %351 = vmatprep.subr.bf16.mxu0 0
    %352 = vmatpush1.bf16.msra.mxu0 %v343
    %353 = vmatprep.subr.bf16.mxu0 0
    %354 = vmatpush1.bf16.msra.mxu0 0
    %355 = vmatprep.subr.bf16.mxu0 0
    %356 = vmatpush1.bf16.msra.mxu0 0
    %357 = vmatprep.subr.bf16.mxu0 0
    %358 = vmatpush1.bf16.msra.mxu0 0
    %359 = vmatprep.subr.bf16.mxu0 0
    %360 = vmatpush1.bf16.msra.mxu0 0
    %361 = vmatprep.subr.bf16.mxu0 0
    %362 = vmatpush1.bf16.msra.mxu0 0
    %363 = vmatprep.subr.bf16.mxu0 0
    %364 = vmatpush1.bf16.msra.mxu0 0
    %365 = vmatprep.subr.bf16.mxu0 0
    %366 = vmatpush1.bf16.msra.mxu0 0
    %367 = vmatprep.subr.bf16.mxu0 0
    %368 = vmatpush1.bf16.msra.mxu0 0
    %369 = vmatprep.subr.bf16.mxu0 0
    %370 = vmatpush1.bf16.msra.mxu0 0
    %371 = vmatprep.subr.bf16.mxu0 0
    %372 = vmatpush1.bf16.msra.mxu0 0
    %373 = vmatprep.subr.bf16.mxu0 0
    %374 = vmatpush1.bf16.msra.mxu0 0
    %375 = vmatprep.subr.bf16.mxu0 0
    %376 = vmatpush1.bf16.msra.mxu0 0
    %377 = vmatprep.mubr.bf16.mxu0 0
    %378 = vmatmul.mubr.bf16.gmra.mrb[0].mxu0 %v339
    %v379 = vpop.f32.mrb[0].mxu0
    %v380 = vadd.f32 %v314, %v379
    %v381 = vpop.f32.mrb[0].mxu0
    %v382 = vpop.f32.mrb[0].mxu0
    %v383 = vpop.f32.mrb[0].mxu0
    %384 = vdwg.mxu0
    %vm385 = vcmask 74752
    %v386 = vsel %vm385, %v380, -inf
    %387 = vmax.xlane.f32.xlu0 %v386
    %v388 = vpop.xlane.xlu0 %387
    %v389 = vsub.f32 %v380, %v388
    %v390 = vmul.f32 %v389, 1.442695
    %v391 = vpow.pop %v390
    %v392 = vsel %vm385, %v391, 0.0
    %393 = vadd.xlane.f32.xlu0 %v392
    %v394 = vpop.xlane.xlu0 %393
    %v395 = vlog2.pop %v394
    %v396 = vmul.f32 %v395, 0.6931472
    %v397 = vsub.f32 %v389, %v396
    %398 = vst.msk [vmem:[#allocation2] sm:$0x3] %vm385, %v397
    // Predicated region
    $region22: #{cnn_forward.5} parent=1 // pred_check
      _
    $region23: #{cnn_forward.5} parent=1 // pred_check_branch
      %400 = sbr.rel (0) target = $region25
    $region24: #{cnn_forward.5} parent=1 // pred_region
      %s402 = ssub.s32 32, 32
      %403 = vsyncadd [#allocation3], %s402
      %s405 = sshll.u32 [#allocation2], 4
      %s406 = int_to_ptr.vmem [resolvable:$true] %s405
      %408 = dma.vmem_to_hbm [thread:$0]  %s406, 32, %s5, [#allocation3]
    $region25: #{cnn_forward.5} parent=1 // pred_fallthru
      _
    // Predicated region
    $region26: #{cnn_forward.5} parent=1 // pred_check
      _
    $region27: #{cnn_forward.5} parent=1 // pred_check_branch
      %410 = sbr.rel (0) target = $region29
    $region28: #{cnn_forward.5} parent=1 // pred_region
      %411 = dma.done [#allocation3], 32
    $region29: #{cnn_forward.5} parent=1 // pred_fallthru
      _
    %412 = vsyncpa [#allocation3], 1

</llo_original>
